<compile_context>
chip_gen: v6e
topology: v6e:2x2x1
jax: 0.10.0
libtpu: 0.0.40
codegen_flags: <defaults>
</compile_context>

<pallas_src>
import functools

import jax
import jax.numpy as jnp
from jax import lax
from jax.experimental import pallas as pl
from jax.experimental.pallas import tpu as pltpu


def _round_up(x, m):
    return ((x + m - 1) // m) * m


# ----------------------------------------------------------------------------
# Fused kernel: triplet hinge (tiled over T) + correlation loss (once)
# ----------------------------------------------------------------------------
def _fused_loss_kernel(emb_ref, idx_ref, out_ref, acc_ref, *,
                       margin, alfa, num_triplets, block_rows, gather_dtype):
    i = pl.program_id(0)
    last = pl.num_programs(0) - 1

    @pl.when(i == 0)
    def _init():
        acc_ref[...] = jnp.zeros_like(acc_ref)

    emb = emb_ref[...]                                   # (N, D) f32, VMEM-resident
    n_obs, d = emb.shape

    # ---- triplet hinge for this tile -------------------------------------
    idx = idx_ref[...]                                   # (TT, 3) int32 (one DMA/tile)
    cols = lax.broadcasted_iota(jnp.int32, (block_rows, n_obs), 1)   # (TT, N)
    oh_a = (cols == idx[:, 0:1])
    # signed-difference gather matrices ({+1,0,-1}; exact in bf16 and f32):
    #   sap @ emb == (anchor - positive), san @ emb == (anchor - negative)
    sap = oh_a.astype(gather_dtype) - (cols == idx[:, 1:2]).astype(gather_dtype)
    san = oh_a.astype(gather_dtype) - (cols == idx[:, 2:3]).astype(gather_dtype)
    emb_g = emb.astype(gather_dtype)
    dap = jnp.dot(sap, emb_g, preferred_element_type=jnp.float32)    # (TT, D)
    dan = jnp.dot(san, emb_g, preferred_element_type=jnp.float32)    # (TT, D)

    # single fused cross-lane reduce for ||a-p||^2 - ||a-n||^2
    dist = jnp.sum(dap * dap - dan * dan, axis=1, keepdims=True)     # (TT, 1)
    hinge = jnp.maximum(dist + margin, 0.0)

    # Padded rows gather row 0 for a/p/n -> dist == 0 -> hinge == margin,
    # so this mask is load-bearing.
    row = i * block_rows + lax.broadcasted_iota(jnp.int32, (block_rows, 1), 0)
    acc_ref[...] += jnp.where(row < num_triplets, hinge, 0.0)        # VMEM accumulate

    # ---- finalize: correlation loss (computed once) + combine -------------
    @pl.when(i == last)
    def _finalize():
        trip_sum = jnp.sum(acc_ref[...])                  # single reduce, once

        mean = jnp.sum(emb, axis=0, keepdims=True) * (1.0 / n_obs)   # (1, D)
        xc = emb - mean
        ss = jnp.sum(xc * xc, axis=0, keepdims=True)      # (1, D) == (N-1)*Var
        xn = xc * lax.rsqrt(ss)                           # EUP rsqrt (free slot)
        # r_ij = cov_ij / sqrt(V_i V_j) == xn^T @ xn (the 1/(N-1) factors cancel).
        # Contracting over axis 0 on both sides; any implied transpose sits on
        # the XLU in the (short) serial epilogue — accepted.
        r = lax.dot_general(xn, xn, (((0,), (0,)), ((), ())),
                            preferred_element_type=jnp.float32)      # (D, D)
        # xn columns are unit-norm -> r_ii == 1, so the off-diagonal mean is
        # (sum(r^2) - D) / (D*(D-1))  — no iotas / compare / select needed.
        corr = (jnp.sum(r * r) - d) / (d * (d - 1))

        out_ref[0, 0] = trip_sum / num_triplets + alfa * corr


# ----------------------------------------------------------------------------
# Module-equivalent forward
# ----------------------------------------------------------------------------
def correlation_matrix_loss_forward(embeddings, triplets, *, margin=1.0,
                                    alfa=0.1, block_rows=None,
                                    gather_in_bf16=False):
    embeddings = jnp.asarray(embeddings, jnp.float32)
    triplets = jnp.asarray(triplets, jnp.int32)
    n_obs, d = embeddings.shape
    t = int(triplets.shape[0])

    # Per-generation VMEM budget: v7x has 64 MiB/TC, v5e/v6e have 128 MiB.
    try:
        vmem_cap = int(pltpu.get_tpu_info().vmem_capacity_bytes)
    except Exception:
        vmem_cap = 64 * 1024 * 1024
    vmem_limit = int(min(100 * 1024 * 1024, (vmem_cap * 3) // 4))

    # Tile the triplet axis (8-aligned). Bigger tiles amortize the ~0.35us
    # per-grid-step overhead; sized so the per-tile working set fits the budget.
    if block_rows is None:
        budget = max(vmem_limit // 3, 8 * 1024 * 1024)
        per_row = 4 * (3 * n_obs + 2 * d + 2)    # signed mats + diff tiles + acc
        block_rows = max(64, min(2048, budget // max(per_row, 1)))
    block_rows = _round_up(min(int(block_rows), max(t, 1)), 8)

    t_pad = _round_up(t, block_rows)
    num_tiles = t_pad // block_rows
    trips = jnp.pad(triplets, ((0, t_pad - t), (0, 0)))   # padded rows masked in-kernel

    gather_dtype = jnp.bfloat16 if gather_in_bf16 else jnp.float32
    kernel = functools.partial(
        _fused_loss_kernel,
        margin=float(margin), alfa=float(alfa),
        num_triplets=t, block_rows=block_rows, gather_dtype=gather_dtype)

    def build_call(single_buffer_emb):
        if single_buffer_emb:
            # constant index_map -> never re-fetched; single buffer saves VMEM.
            emb_spec = pl.BlockSpec((n_obs, d), lambda i: (0, 0),
                                    pipeline_mode=pl.Buffered(1))
        else:
            emb_spec = pl.BlockSpec((n_obs, d), lambda i: (0, 0))
        return pl.pallas_call(
            kernel,
            out_shape=jax.ShapeDtypeStruct((1, 1), jnp.float32),
            grid_spec=pltpu.PrefetchScalarGridSpec(
                num_scalar_prefetch=0,
                grid=(num_tiles,),
                in_specs=[
                    emb_spec,                                          # resident table
                    pl.BlockSpec((block_rows, 3), lambda i: (i, 0)),   # merged a/p/n ids
                ],
                out_specs=pl.BlockSpec(memory_space=pltpu.MemorySpace.SMEM),
                scratch_shapes=[pltpu.VMEM((block_rows, 1), jnp.float32)],
            ),
            compiler_params=pltpu.CompilerParams(
                dimension_semantics=("arbitrary",),
                vmem_limit_bytes=vmem_limit),
        )

    try:
        out = build_call(True)(embeddings, trips)
    except Exception:
        # pl.Buffered(1) single-buffering not supported by this Pallas build;
        # fall back to the default double-buffered resident table.
        out = build_call(False)(embeddings, trips)

    return out[0, 0], t


# ----------------------------------------------------------------------------
# Deterministic "triplet selector" stand-in (host-side, plain Python)
# ----------------------------------------------------------------------------
def make_triplets(labels):
    n = len(labels)
    trips = []
    for a in range(n):
        for p in range(n):
            if p != a and labels[p] == labels[a]:
                neg = (a + 1) % n
                while labels[neg] == labels[a]:
                    neg = (neg + 1) % n
                trips.append((a, p, neg))
    return jnp.asarray(trips, dtype=jnp.int32)


# ----------------------------------------------------------------------------
# Pure-JAX reference (matches the PyTorch module semantics)
# ----------------------------------------------------------------------------
def _reference_loss(embeddings, triplets, margin, alfa):
    a = embeddings[triplets[:, 0]]
    p = embeddings[triplets[:, 1]]
    n = embeddings[triplets[:, 2]]
    ap = jnp.sum((a - p) ** 2, axis=1)
    an = jnp.sum((a - n) ** 2, axis=1)
    trip = jnp.mean(jnp.maximum(ap - an + margin, 0.0))

    x = embeddings
    n_obs, d = x.shape
    xc = x - jnp.mean(x, axis=0, keepdims=True)
    cov = (xc.T @ xc) / (n_obs - 1)
    v = jnp.diag(cov)
    r2 = (cov ** 2) / (v[:, None] * v[None, :])
    mask = ~jnp.eye(d, dtype=bool)
    corr = jnp.sum(jnp.where(mask, r2, 0.0)) / (d * (d - 1))
    return trip + alfa * corr


if __name__ == "__main__":
    key = jax.random.PRNGKey(0)
    N, D = 16, 32                                    # batch of 16 embeddings, dim 32
    embeddings = jax.random.normal(key, (N, D), dtype=jnp.float32)
    labels = [i % 4 for i in range(N)]               # 4 classes, deterministic
    triplets = make_triplets(labels)                 # (T, 3) = (48, 3) int32

    # block_rows=32 -> 2 grid tiles (exercises accumulation + padded-row mask)
    loss, num_triplets = correlation_matrix_loss_forward(
        embeddings, triplets, margin=1.0, alfa=0.1, block_rows=32)
    loss = jax.block_until_ready(loss)

    ref = _reference_loss(embeddings, triplets, 1.0, 0.1)

    assert jnp.isfinite(loss)
    assert num_triplets == triplets.shape[0]
    assert jnp.allclose(loss, ref, rtol=2e-3, atol=1e-3), (loss, ref)
    print("KERNEL_OK")
</pallas_src>

<mosaic_0001>
module attributes {stable_mosaic.version = 11 : i64} {
  func.func @_fused_loss_kernel(%arg0: i32, %arg1: memref<16x32xf32, #tpu.memory_space<vmem>>, %arg2: memref<32x3xi32, #tpu.memory_space<vmem>>, %arg3: memref<1x1xf32, #tpu.memory_space<smem>>, %arg4: memref<32x1xf32, #tpu.memory_space<vmem>>) attributes {dimension_semantics = [#tpu.dimension_semantics<arbitrary>], iteration_bounds = array<i64: 2>, scalar_prefetch = 0 : i64, scratch_operands = 1 : i64, tpu.core_type = #tpu.core_type<tc>, window_params = [{pipeline_mode = #tpu.pipeline_mode<synchronous>, transform_indices = @transform_0, window_bounds = array<i64: 16, 32>}, {transform_indices = @transform_1, window_bounds = array<i64: 32, 3>}, {transform_indices = @transform_2, window_bounds = array<i64: 1, 1>}]} {
    %c0_i32 = arith.constant 0 : i32
    %0 = arith.cmpi eq, %arg0, %c0_i32 : i32
    %1 = arith.extui %0 : i1 to i32
    %c0_i32_0 = arith.constant 0 : i32
    %2 = arith.cmpi ne, %1, %c0_i32_0 : i32
    scf.if %2 {
      %cst_14 = arith.constant 0.000000e+00 : f32
      %50 = vector.broadcast %cst_14 : f32 to vector<32x1xf32>
      %c0_15 = arith.constant 0 : index
      %c0_16 = arith.constant 0 : index
      %51 = vector.load %arg4[%c0_15, %c0_16] : memref<32x1xf32, #tpu.memory_space<vmem>>, vector<32x1xf32>
      tpu.vector_store %arg4[%c0_15, %c0_16], %50 {strides = array<i32>} : memref<32x1xf32, #tpu.memory_space<vmem>>, vector<32x1xf32>,
    } else {
    }
    %c0 = arith.constant 0 : index
    %c0_1 = arith.constant 0 : index
    %3 = vector.load %arg1[%c0, %c0_1] : memref<16x32xf32, #tpu.memory_space<vmem>>, vector<16x32xf32>
    %c0_2 = arith.constant 0 : index
    %c0_3 = arith.constant 0 : index
    %4 = vector.load %arg2[%c0_2, %c0_3] : memref<32x3xi32, #tpu.memory_space<vmem>>, vector<32x3xi32>
    %5 = tpu.iota {dimensions = array<i32: 1>} : vector<32x16xi32>
    %6 = vector.extract_strided_slice %4 {offsets = [0, 0], sizes = [32, 1], strides = [1, 1]} : vector<32x3xi32> to vector<32x1xi32>
    %7 = vector.broadcast %6 : vector<32x1xi32> to vector<32x16xi32>
    %8 = arith.cmpi eq, %5, %7 : vector<32x16xi32>
    %9 = arith.extui %8 : vector<32x16xi1> to vector<32x16xi32>
    %10 = arith.sitofp %9 : vector<32x16xi32> to vector<32x16xf32>
    %11 = vector.extract_strided_slice %4 {offsets = [0, 1], sizes = [32, 1], strides = [1, 1]} : vector<32x3xi32> to vector<32x1xi32>
    %12 = vector.broadcast %11 : vector<32x1xi32> to vector<32x16xi32>
    %13 = arith.cmpi eq, %5, %12 : vector<32x16xi32>
    %14 = arith.extui %13 : vector<32x16xi1> to vector<32x16xi32>
    %15 = arith.sitofp %14 : vector<32x16xi32> to vector<32x16xf32>
    %16 = arith.subf %10, %15 : vector<32x16xf32>
    %17 = arith.extui %8 : vector<32x16xi1> to vector<32x16xi32>
    %18 = arith.sitofp %17 : vector<32x16xi32> to vector<32x16xf32>
    %19 = vector.extract_strided_slice %4 {offsets = [0, 2], sizes = [32, 1], strides = [1, 1]} : vector<32x3xi32> to vector<32x1xi32>
    %20 = vector.broadcast %19 : vector<32x1xi32> to vector<32x16xi32>
    %21 = arith.cmpi eq, %5, %20 : vector<32x16xi32>
    %22 = arith.extui %21 : vector<32x16xi1> to vector<32x16xi32>
    %23 = arith.sitofp %22 : vector<32x16xi32> to vector<32x16xf32>
    %24 = arith.subf %18, %23 : vector<32x16xf32>
    %cst = arith.constant dense<0.000000e+00> : vector<32x32xf32>
    %25 = tpu.matmul %16, %3, %cst {dimension_numbers = #tpu.dot_dimension_numbers<[1], [0], [0], [1], [0, 0, 1, 1], [], []>} : vector<32x16xf32>, vector<16x32xf32>, vector<32x32xf32> -> vector<32x32xf32>
    %cst_4 = arith.constant dense<0.000000e+00> : vector<32x32xf32>
    %26 = tpu.matmul %24, %3, %cst_4 {dimension_numbers = #tpu.dot_dimension_numbers<[1], [0], [0], [1], [0, 0, 1, 1], [], []>} : vector<32x16xf32>, vector<16x32xf32>, vector<32x32xf32> -> vector<32x32xf32>
    %27 = arith.mulf %25, %25 : vector<32x32xf32>
    %28 = arith.mulf %26, %26 : vector<32x32xf32>
    %29 = arith.subf %27, %28 : vector<32x32xf32>
    %cst_5 = arith.constant dense<0.000000e+00> : vector<32xf32>
    %30 = vector.multi_reduction <add>, %29, %cst_5 [1] : vector<32x32xf32> to vector<32xf32>
    %31 = vector.shape_cast %30 : vector<32xf32> to vector<32x1xf32>
    %cst_6 = arith.constant 1.000000e+00 : f32
    %32 = vector.broadcast %cst_6 : f32 to vector<32x1xf32>
    %33 = arith.addf %31, %32 : vector<32x1xf32>
    %cst_7 = arith.constant 0.000000e+00 : f32
    %34 = vector.broadcast %cst_7 : f32 to vector<32x1xf32>
    %35 = arith.maximumf %33, %34 : vector<32x1xf32>
    %c32_i32 = arith.constant 32 : i32
    %36 = arith.muli %arg0, %c32_i32 : i32
    %37 = tpu.iota {dimensions = array<i32: 0>} : vector<32x1xi32>
    %38 = vector.broadcast %36 : i32 to vector<32x1xi32>
    %39 = arith.addi %38, %37 : vector<32x1xi32>
    %c0_8 = arith.constant 0 : index
    %c0_9 = arith.constant 0 : index
    %40 = vector.load %arg4[%c0_8, %c0_9] : memref<32x1xf32, #tpu.memory_space<vmem>>, vector<32x1xf32>
    %c48_i32 = arith.constant 48 : i32
    %41 = vector.broadcast %c48_i32 : i32 to vector<32x1xi32>
    %42 = arith.cmpi slt, %39, %41 : vector<32x1xi32>
    %cst_10 = arith.constant 0.000000e+00 : f32
    %43 = vector.broadcast %cst_10 : f32 to vector<32x1xf32>
    %44 = arith.select %42, %35, %43 : vector<32x1xi1>, vector<32x1xf32>
    %45 = arith.addf %40, %44 : vector<32x1xf32>
    %c0_11 = arith.constant 0 : index
    %c0_12 = arith.constant 0 : index
    %46 = vector.load %arg4[%c0_11, %c0_12] : memref<32x1xf32, #tpu.memory_space<vmem>>, vector<32x1xf32>
    tpu.vector_store %arg4[%c0_11, %c0_12], %45 {strides = array<i32>} : memref<32x1xf32, #tpu.memory_space<vmem>>, vector<32x1xf32>,
    %c1_i32 = arith.constant 1 : i32
    %47 = arith.cmpi eq, %arg0, %c1_i32 : i32
    %48 = arith.extui %47 : i1 to i32
    %c0_i32_13 = arith.constant 0 : i32
    %49 = arith.cmpi ne, %48, %c0_i32_13 : i32
    scf.if %49 {
      %c0_14 = arith.constant 0 : index
      %c0_15 = arith.constant 0 : index
      %50 = vector.load %arg4[%c0_14, %c0_15] : memref<32x1xf32, #tpu.memory_space<vmem>>, vector<32x1xf32>
      %51 = vector.shape_cast %50 : vector<32x1xf32> to vector<1x32x1xf32>
      %cst_16 = arith.constant dense<0.000000e+00> : vector<1xf32>
      %52 = vector.multi_reduction <add>, %51, %cst_16 [1, 2] : vector<1x32x1xf32> to vector<1xf32>
      %53 = vector.shape_cast %52 : vector<1xf32> to vector<1x1x1xf32>
      %54 = vector.extract %53[0, 0, 0] : f32 from vector<1x1x1xf32>
      %cst_17 = arith.constant dense<0.000000e+00> : vector<32xf32>
      %55 = vector.multi_reduction <add>, %3, %cst_17 [0] : vector<16x32xf32> to vector<32xf32>
      %56 = vector.shape_cast %55 : vector<32xf32> to vector<1x32xf32>
      %cst_18 = arith.constant 6.250000e-02 : f32
      %57 = vector.broadcast %cst_18 : f32 to vector<1x32xf32>
      %58 = arith.mulf %56, %57 : vector<1x32xf32>
      %59 = vector.broadcast %58 : vector<1x32xf32> to vector<16x32xf32>
      %60 = arith.subf %3, %59 : vector<16x32xf32>
      %61 = arith.mulf %60, %60 : vector<16x32xf32>
      %cst_19 = arith.constant dense<0.000000e+00> : vector<32xf32>
      %62 = vector.multi_reduction <add>, %61, %cst_19 [0] : vector<16x32xf32> to vector<32xf32>
      %63 = vector.shape_cast %62 : vector<32xf32> to vector<1x32xf32>
      %64 = math.rsqrt %63 : vector<1x32xf32>
      %65 = vector.broadcast %64 : vector<1x32xf32> to vector<16x32xf32>
      %66 = arith.mulf %60, %65 : vector<16x32xf32>
      %cst_20 = arith.constant dense<0.000000e+00> : vector<32x32xf32>
      %67 = tpu.matmul %66, %66, %cst_20 {dimension_numbers = #tpu.dot_dimension_numbers<[0], [0], [1], [1], [0, 1, 1, 1], [], []>} : vector<16x32xf32>, vector<16x32xf32>, vector<32x32xf32> -> vector<32x32xf32>
      %68 = arith.mulf %67, %67 : vector<32x32xf32>
      %69 = vector.shape_cast %68 : vector<32x32xf32> to vector<1x32x32xf32>
      %cst_21 = arith.constant dense<0.000000e+00> : vector<1xf32>
      %70 = vector.multi_reduction <add>, %69, %cst_21 [1, 2] : vector<1x32x32xf32> to vector<1xf32>
      %71 = vector.shape_cast %70 : vector<1xf32> to vector<1x1x1xf32>
      %72 = vector.extract %71[0, 0, 0] : f32 from vector<1x1x1xf32>
      %cst_22 = arith.constant 3.200000e+01 : f32
      %73 = arith.subf %72, %cst_22 : f32
      %cst_23 = arith.constant 9.920000e+02 : f32
      %74 = arith.divf %73, %cst_23 : f32
      %cst_24 = arith.constant 4.800000e+01 : f32
      %75 = arith.divf %54, %cst_24 : f32
      %cst_25 = arith.constant 1.000000e-01 : f32
      %76 = arith.mulf %cst_25, %74 : f32
      %77 = arith.addf %75, %76 : f32
      %c0_26 = arith.constant 0 : index
      %c0_27 = arith.constant 0 : index
      %78 = memref.load %arg3[%c0_26, %c0_27] : memref<1x1xf32, #tpu.memory_space<smem>>
      memref.store %77, %arg3[%c0_26, %c0_27] : memref<1x1xf32, #tpu.memory_space<smem>>
    } else {
    }
    return
  }
  func.func @transform_0(%arg0: i32) -> (i32, i32) {
    %c0_i32 = arith.constant 0 : i32
    %c0_i32_0 = arith.constant 0 : i32
    %c0_i32_1 = arith.constant 0 : i32
    return %c0_i32, %c0_i32_0 : i32, i32
  }
  func.func @transform_1(%arg0: i32) -> (i32, i32) {
    %c0_i32 = arith.constant 0 : i32
    %c0_i32_0 = arith.constant 0 : i32
    return %arg0, %c0_i32 : i32, i32
  }
  func.func @transform_2(%arg0: i32) -> (i32, i32) {
    %c0_i32 = arith.constant 0 : i32
    %c0_i32_0 = arith.constant 0 : i32
    %c0_i32_1 = arith.constant 0 : i32
    return %c0_i32, %c0_i32_0 : i32, i32
  }
}

module attributes {stable_mosaic.version = 11 : i64} {
  func.func @_fused_loss_kernel(%arg0: i32, %arg1: memref<16x32xf32, #tpu.memory_space<vmem>>, %arg2: memref<32x3xi32, #tpu.memory_space<vmem>>, %arg3: memref<1x1xf32, #tpu.memory_space<smem>>, %arg4: memref<32x1xf32, #tpu.memory_space<vmem>>) attributes {dimension_semantics = [#tpu.dimension_semantics<arbitrary>], iteration_bounds = array<i64: 2>, scalar_prefetch = 0 : i64, scratch_operands = 1 : i64, tpu.core_type = #tpu.core_type<tc>, window_params = [{pipeline_mode = #tpu.pipeline_mode<synchronous>, transform_indices = @transform_0, window_bounds = array<i64: 16, 32>}, {transform_indices = @transform_1, window_bounds = array<i64: 32, 3>}, {transform_indices = @transform_2, window_bounds = array<i64: 1, 1>}]} {
    %c0_i32 = arith.constant 0 : i32
    %0 = arith.cmpi eq, %arg0, %c0_i32 : i32
    %1 = arith.extui %0 : i1 to i32
    %c0_i32_0 = arith.constant 0 : i32
    %2 = arith.cmpi ne, %1, %c0_i32_0 : i32
    scf.if %2 {
      %cst_14 = arith.constant 0.000000e+00 : f32
      %50 = vector.broadcast %cst_14 : f32 to vector<32x1xf32>
      %c0_15 = arith.constant 0 : index
      %c0_16 = arith.constant 0 : index
      %51 = vector.load %arg4[%c0_15, %c0_16] : memref<32x1xf32, #tpu.memory_space<vmem>>, vector<32x1xf32>
      tpu.vector_store %arg4[%c0_15, %c0_16], %50 {strides = array<i32>} : memref<32x1xf32, #tpu.memory_space<vmem>>, vector<32x1xf32>,
    } else {
    }
    %c0 = arith.constant 0 : index
    %c0_1 = arith.constant 0 : index
    %3 = vector.load %arg1[%c0, %c0_1] : memref<16x32xf32, #tpu.memory_space<vmem>>, vector<16x32xf32>
    %c0_2 = arith.constant 0 : index
    %c0_3 = arith.constant 0 : index
    %4 = vector.load %arg2[%c0_2, %c0_3] : memref<32x3xi32, #tpu.memory_space<vmem>>, vector<32x3xi32>
    %5 = tpu.iota {dimensions = array<i32: 1>} : vector<32x16xi32>
    %6 = vector.extract_strided_slice %4 {offsets = [0, 0], sizes = [32, 1], strides = [1, 1]} : vector<32x3xi32> to vector<32x1xi32>
    %7 = vector.broadcast %6 : vector<32x1xi32> to vector<32x16xi32>
    %8 = arith.cmpi eq, %5, %7 : vector<32x16xi32>
    %9 = arith.extui %8 : vector<32x16xi1> to vector<32x16xi32>
    %10 = arith.sitofp %9 : vector<32x16xi32> to vector<32x16xf32>
    %11 = vector.extract_strided_slice %4 {offsets = [0, 1], sizes = [32, 1], strides = [1, 1]} : vector<32x3xi32> to vector<32x1xi32>
    %12 = vector.broadcast %11 : vector<32x1xi32> to vector<32x16xi32>
    %13 = arith.cmpi eq, %5, %12 : vector<32x16xi32>
    %14 = arith.extui %13 : vector<32x16xi1> to vector<32x16xi32>
    %15 = arith.sitofp %14 : vector<32x16xi32> to vector<32x16xf32>
    %16 = arith.subf %10, %15 : vector<32x16xf32>
    %17 = arith.extui %8 : vector<32x16xi1> to vector<32x16xi32>
    %18 = arith.sitofp %17 : vector<32x16xi32> to vector<32x16xf32>
    %19 = vector.extract_strided_slice %4 {offsets = [0, 2], sizes = [32, 1], strides = [1, 1]} : vector<32x3xi32> to vector<32x1xi32>
    %20 = vector.broadcast %19 : vector<32x1xi32> to vector<32x16xi32>
    %21 = arith.cmpi eq, %5, %20 : vector<32x16xi32>
    %22 = arith.extui %21 : vector<32x16xi1> to vector<32x16xi32>
    %23 = arith.sitofp %22 : vector<32x16xi32> to vector<32x16xf32>
    %24 = arith.subf %18, %23 : vector<32x16xf32>
    %cst = arith.constant dense<0.000000e+00> : vector<32x32xf32>
    %25 = tpu.matmul %16, %3, %cst {dimension_numbers = #tpu.dot_dimension_numbers<[1], [0], [0], [1], [0, 0, 1, 1], [], []>} : vector<32x16xf32>, vector<16x32xf32>, vector<32x32xf32> -> vector<32x32xf32>
    %cst_4 = arith.constant dense<0.000000e+00> : vector<32x32xf32>
    %26 = tpu.matmul %24, %3, %cst_4 {dimension_numbers = #tpu.dot_dimension_numbers<[1], [0], [0], [1], [0, 0, 1, 1], [], []>} : vector<32x16xf32>, vector<16x32xf32>, vector<32x32xf32> -> vector<32x32xf32>
    %27 = arith.mulf %25, %25 : vector<32x32xf32>
    %28 = arith.mulf %26, %26 : vector<32x32xf32>
    %29 = arith.subf %27, %28 : vector<32x32xf32>
    %cst_5 = arith.constant dense<0.000000e+00> : vector<32xf32>
    %30 = vector.multi_reduction <add>, %29, %cst_5 [1] : vector<32x32xf32> to vector<32xf32>
    %31 = vector.shape_cast %30 : vector<32xf32> to vector<32x1xf32>
    %cst_6 = arith.constant 1.000000e+00 : f32
    %32 = vector.broadcast %cst_6 : f32 to vector<32x1xf32>
    %33 = arith.addf %31, %32 : vector<32x1xf32>
    %cst_7 = arith.constant 0.000000e+00 : f32
    %34 = vector.broadcast %cst_7 : f32 to vector<32x1xf32>
    %35 = arith.maximumf %33, %34 : vector<32x1xf32>
    %c32_i32 = arith.constant 32 : i32
    %36 = arith.muli %arg0, %c32_i32 : i32
    %37 = tpu.iota {dimensions = array<i32: 0>} : vector<32x1xi32>
    %38 = vector.broadcast %36 : i32 to vector<32x1xi32>
    %39 = arith.addi %38, %37 : vector<32x1xi32>
    %c0_8 = arith.constant 0 : index
    %c0_9 = arith.constant 0 : index
    %40 = vector.load %arg4[%c0_8, %c0_9] : memref<32x1xf32, #tpu.memory_space<vmem>>, vector<32x1xf32>
    %c48_i32 = arith.constant 48 : i32
    %41 = vector.broadcast %c48_i32 : i32 to vector<32x1xi32>
    %42 = arith.cmpi slt, %39, %41 : vector<32x1xi32>
    %cst_10 = arith.constant 0.000000e+00 : f32
    %43 = vector.broadcast %cst_10 : f32 to vector<32x1xf32>
    %44 = arith.select %42, %35, %43 : vector<32x1xi1>, vector<32x1xf32>
    %45 = arith.addf %40, %44 : vector<32x1xf32>
    %c0_11 = arith.constant 0 : index
    %c0_12 = arith.constant 0 : index
    %46 = vector.load %arg4[%c0_11, %c0_12] : memref<32x1xf32, #tpu.memory_space<vmem>>, vector<32x1xf32>
    tpu.vector_store %arg4[%c0_11, %c0_12], %45 {strides = array<i32>} : memref<32x1xf32, #tpu.memory_space<vmem>>, vector<32x1xf32>,
    %c1_i32 = arith.constant 1 : i32
    %47 = arith.cmpi eq, %arg0, %c1_i32 : i32
    %48 = arith.extui %47 : i1 to i32
    %c0_i32_13 = arith.constant 0 : i32
    %49 = arith.cmpi ne, %48, %c0_i32_13 : i32
    scf.if %49 {
      %c0_14 = arith.constant 0 : index
      %c0_15 = arith.constant 0 : index
      %50 = vector.load %arg4[%c0_14, %c0_15] : memref<32x1xf32, #tpu.memory_space<vmem>>, vector<32x1xf32>
      %51 = vector.shape_cast %50 : vector<32x1xf32> to vector<1x32x1xf32>
      %cst_16 = arith.constant dense<0.000000e+00> : vector<1xf32>
      %52 = vector.multi_reduction <add>, %51, %cst_16 [1, 2] : vector<1x32x1xf32> to vector<1xf32>
      %53 = vector.shape_cast %52 : vector<1xf32> to vector<1x1x1xf32>
      %54 = vector.extract %53[0, 0, 0] : f32 from vector<1x1x1xf32>
      %cst_17 = arith.constant dense<0.000000e+00> : vector<32xf32>
      %55 = vector.multi_reduction <add>, %3, %cst_17 [0] : vector<16x32xf32> to vector<32xf32>
      %56 = vector.shape_cast %55 : vector<32xf32> to vector<1x32xf32>
      %cst_18 = arith.constant 6.250000e-02 : f32
      %57 = vector.broadcast %cst_18 : f32 to vector<1x32xf32>
      %58 = arith.mulf %56, %57 : vector<1x32xf32>
      %59 = vector.broadcast %58 : vector<1x32xf32> to vector<16x32xf32>
      %60 = arith.subf %3, %59 : vector<16x32xf32>
      %61 = arith.mulf %60, %60 : vector<16x32xf32>
      %cst_19 = arith.constant dense<0.000000e+00> : vector<32xf32>
      %62 = vector.multi_reduction <add>, %61, %cst_19 [0] : vector<16x32xf32> to vector<32xf32>
      %63 = vector.shape_cast %62 : vector<32xf32> to vector<1x32xf32>
      %64 = math.rsqrt %63 : vector<1x32xf32>
      %65 = vector.broadcast %64 : vector<1x32xf32> to vector<16x32xf32>
      %66 = arith.mulf %60, %65 : vector<16x32xf32>
      %cst_20 = arith.constant dense<0.000000e+00> : vector<32x32xf32>
      %67 = tpu.matmul %66, %66, %cst_20 {dimension_numbers = #tpu.dot_dimension_numbers<[0], [0], [1], [1], [0, 1, 1, 1], [], []>} : vector<16x32xf32>, vector<16x32xf32>, vector<32x32xf32> -> vector<32x32xf32>
      %68 = arith.mulf %67, %67 : vector<32x32xf32>
      %69 = vector.shape_cast %68 : vector<32x32xf32> to vector<1x32x32xf32>
      %cst_21 = arith.constant dense<0.000000e+00> : vector<1xf32>
      %70 = vector.multi_reduction <add>, %69, %cst_21 [1, 2] : vector<1x32x32xf32> to vector<1xf32>
      %71 = vector.shape_cast %70 : vector<1xf32> to vector<1x1x1xf32>
      %72 = vector.extract %71[0, 0, 0] : f32 from vector<1x1x1xf32>
      %cst_22 = arith.constant 3.200000e+01 : f32
      %73 = arith.subf %72, %cst_22 : f32
      %cst_23 = arith.constant 9.920000e+02 : f32
      %74 = arith.divf %73, %cst_23 : f32
      %cst_24 = arith.constant 4.800000e+01 : f32
      %75 = arith.divf %54, %cst_24 : f32
      %cst_25 = arith.constant 1.000000e-01 : f32
      %76 = arith.mulf %cst_25, %74 : f32
      %77 = arith.addf %75, %76 : f32
      %c0_26 = arith.constant 0 : index
      %c0_27 = arith.constant 0 : index
      %78 = memref.load %arg3[%c0_26, %c0_27] : memref<1x1xf32, #tpu.memory_space<smem>>
      memref.store %77, %arg3[%c0_26, %c0_27] : memref<1x1xf32, #tpu.memory_space<smem>>
    } else {
    }
    return
  }
  func.func @transform_0(%arg0: i32) -> (i32, i32) {
    %c0_i32 = arith.constant 0 : i32
    %c0_i32_0 = arith.constant 0 : i32
    %c0_i32_1 = arith.constant 0 : i32
    return %c0_i32, %c0_i32_0 : i32, i32
  }
  func.func @transform_1(%arg0: i32) -> (i32, i32) {
    %c0_i32 = arith.constant 0 : i32
    %c0_i32_0 = arith.constant 0 : i32
    return %arg0, %c0_i32 : i32, i32
  }
  func.func @transform_2(%arg0: i32) -> (i32, i32) {
    %c0_i32 = arith.constant 0 : i32
    %c0_i32_0 = arith.constant 0 : i32
    %c0_i32_1 = arith.constant 0 : i32
    return %c0_i32, %c0_i32_0 : i32, i32
  }
}

</mosaic_0001>

<llo_original>
// kernel: tpu_custom_call.1
$region0: #{tpu_custom_call.1}
  #allocation0 [shape = 'u32[]', space=smem, size = 0x4, offset = 0x4, fixed_abs, tag = 'smem constant byte address 0x4 - core index']
  #allocation1 [shape = 'u32[144,128]{1,0:T(1,128)}', space=vmem, size = 0x12000, scoped, tag = 'internal scratch']
  #allocation2 [shape = 'f32[32,1]{1,0:T(8,128)}', space=vmem, size = 0x4000, scoped, tag = 'scratch operand']
  %s0 = inlined_call_operand.vmem [shape: f32[16,32], index: 0, kind: input, shape index: {}]
  %s1 = inlined_call_operand.vmem [shape: s32[64,3], index: 1, kind: input, shape index: {}]
  %s2 = inlined_call_operand.hbm [shape: f32[1,1], index: 2, kind: output, shape index: {}]
  %s3 = sld [smem:[#allocation0]]
  $region49: #{tpu_custom_call.1} parent=0
    _
  %s5 = ssub.s32 1, %s3
  %s6 = scalar_select 0, %s5, %s3
  $region1: #{tpu_custom_call.1} parent=0
    #allocation3 [shape = 'u8[512]{0}', space=smem, size = 0x200, scoped, tag = 'output window, operand 0, single buffered']
    #allocation4 [shape = 's32[2]{0}', space=sflag, size = 0x8, scoped, tag = 'scoped memory for tpu_custom_call.1']
    %7 = vsyncpa [#allocation4], 0
    loop: start=0, step=1, limit=4
    $region2: #{tpu_custom_call.1} parent=1 // loop_pre_header
      _
    $region3: #{tpu_custom_call.1} parent=1 // loop_header
      %s9 = sphi 0, %s13
      %p10 = scmp.ge.s32.totalorder %s9, 4
      %s17 = sphi 0, %s17
      %s19 = sphi 0, %s17
      %s20 = sphi 0, %s19
      %s34 = sphi 0, %s20
      %s40 = sphi 0, %s42
      %s43 = sphi 0, %s40
      %s44 = sphi 0, %s43
      %s60 = sphi 0, %s44
      %s64 = sphi 0, %s64
      %s66 = sphi 0, %s64
      %s67 = sphi 0, %s66
      %s81 = sphi 0, %s67
    $region4: #{tpu_custom_call.1} parent=1 // loop_header_branch
      %12 = sbr.rel (%p10) target = $region8
    $region5: #{tpu_custom_call.1} parent=1 // loop_body
      %s14 = ssub.s32 %s9, 1
      %s15 = ssub.s32 %s9, 2
      %s16 = sadd.s32 %s9, 1
      %s18 = sadd.s32 %s17, 1
      %p21 = scmp.eq.s32.totalorder %s9, 1
      %p22 = scmp.ne.s32.totalorder %s17, %s19
      %p23 = scmp.eq.s32.totalorder %s9, 0
      %p24 = por %p22, %p23
      %p25 = scmp.ne.s32.totalorder %s17, %s19
      %p26 = scmp.eq.s32.totalorder %s14, 1
      %p27 = por %p25, %p26
      %p28 = scmp.ne.s32.totalorder %s19, %s20
      %p29 = scmp.eq.s32.totalorder %s14, 0
      %p30 = por %p28, %p29
      %p31 = scmp.ne.s32.totalorder %s19, %s20
      %p32 = scmp.eq.s32.totalorder %s15, 1
      %p33 = por %p31, %p32
      %p35 = scmp.ne.s32.totalorder %s20, %s34
      %p36 = scmp.eq.s32.totalorder %s15, 0
      %p37 = por %p35, %p36
      %s38 = ssub.s32 %s9, %s16
      %p39 = scmp.eq.s32.totalorder %s38, 0
      %s41 = sadd.s32 %s40, 1
      %s42 = scalar_select %p39, %s40, %s41
      %p45 = pneg %p39
      %p46 = scmp.eq.s32.totalorder %s9, 1
      %p47 = por %p45, %p46
      %p48 = scmp.ne.s32.totalorder %s40, %s43
      %p49 = scmp.eq.s32.totalorder %s9, 0
      %p50 = por %p48, %p49
      %p51 = scmp.ne.s32.totalorder %s40, %s43
      %p52 = scmp.eq.s32.totalorder %s14, 1
      %p53 = por %p51, %p52
      %p54 = scmp.ne.s32.totalorder %s43, %s44
      %p55 = scmp.eq.s32.totalorder %s14, 0
      %p56 = por %p54, %p55
      %p57 = scmp.ne.s32.totalorder %s43, %s44
      %p58 = scmp.eq.s32.totalorder %s15, 1
      %p59 = por %p57, %p58
      %p61 = scmp.ne.s32.totalorder %s44, %s60
      %p62 = scmp.eq.s32.totalorder %s15, 0
      %p63 = por %p61, %p62
      %s65 = sadd.s32 %s64, 1
      %p68 = scmp.eq.s32.totalorder %s9, 1
      %p69 = scmp.ne.s32.totalorder %s64, %s66
      %p70 = scmp.eq.s32.totalorder %s9, 0
      %p71 = por %p69, %p70
      %p72 = scmp.ne.s32.totalorder %s64, %s66
      %p73 = scmp.eq.s32.totalorder %s14, 1
      %p74 = por %p72, %p73
      %p75 = scmp.ne.s32.totalorder %s66, %s67
      %p76 = scmp.eq.s32.totalorder %s14, 0
      %p77 = por %p75, %p76
      %p78 = scmp.ne.s32.totalorder %s66, %s67
      %p79 = scmp.eq.s32.totalorder %s15, 1
      %p80 = por %p78, %p79
      %p82 = scmp.ne.s32.totalorder %s67, %s81
      %p83 = scmp.eq.s32.totalorder %s15, 0
      %p84 = por %p82, %p83
      %p85 = scmp.le.s32.totalorder 1, %s9
      %p86 = scmp.lt.s32.totalorder %s9, 3
      %p87 = pnand %p85, %p86
      %p88 = pneg %p87
      // Predicated region
      $region9: #{tpu_custom_call.1} parent=5 // pred_check
        _
      $region10: #{tpu_custom_call.1} parent=5 // pred_check_branch
        %90 = sbr.rel (%p87) target = $region12
      $region11: #{tpu_custom_call.1} parent=5 // pred_region
        %s91 = ssub.s32 %s9, 1
        // Predicated region
        $region13: #{tpu_custom_call.1} parent=11 // pred_check
          %p92 = pneg %p30
        $region14: #{tpu_custom_call.1} parent=11 // pred_check_branch
          %94 = sbr.rel (%p92) target = $region16
        $region15: #{tpu_custom_call.1} parent=11 // pred_region
          _
        $region16: #{tpu_custom_call.1} parent=11 // pred_fallthru
          _
      $region12: #{tpu_custom_call.1} parent=5 // pred_fallthru
        _
      %p95 = scmp.lt.s32.totalorder %s9, 2
      // Predicated region
      $region17: #{tpu_custom_call.1} parent=5 // pred_check
        %p96 = pneg %p95
      $region18: #{tpu_custom_call.1} parent=5 // pred_check_branch
        %98 = sbr.rel (%p96) target = $region20
      $region19: #{tpu_custom_call.1} parent=5 // pred_region
        // Predicated region
        $region21: #{tpu_custom_call.1} parent=19 // pred_check
          %p99 = pneg %p50
        $region22: #{tpu_custom_call.1} parent=19 // pred_check_branch
          %101 = sbr.rel (%p99) target = $region24
        $region23: #{tpu_custom_call.1} parent=19 // pred_region
          %s102 = smul.u32 4, %s9
          %p103 = scmp.lt.s32.totalorder %s102, 7
          %s104 = scalar_select %p103, %s102, 7
          %s105 = smul.addr %s104, 8
          %s106 = scalar_lea.vmem %s1, %s105
          %s107 = smul.u32 4, %s9
        $region24: #{tpu_custom_call.1} parent=19 // pred_fallthru
          _
      $region20: #{tpu_custom_call.1} parent=5 // pred_fallthru
        _
      %p108 = scmp.le.s32.totalorder 1, %s9
      %p109 = scmp.lt.s32.totalorder %s9, 3
      %p110 = pnand %p108, %p109
      %p111 = pneg %p110
      // Predicated region
      $region25: #{tpu_custom_call.1} parent=5 // pred_check
        _
      $region26: #{tpu_custom_call.1} parent=5 // pred_check_branch
        %113 = sbr.rel (%p110) target = $region28
      $region27: #{tpu_custom_call.1} parent=5 // pred_region
        %s114 = ssub.s32 %s9, 1
        %p115 = pneg %p30
        %p116 = pneg %p27
        %s117 = smul.u32 4, %s14
        %p118 = scmp.lt.s32.totalorder %s117, 7
        %s119 = scalar_select %p118, %s117, 7
        %s120 = smul.addr %s119, 8
        %s121 = scalar_lea.vmem %s1, %s120
        %p122 = pneg %p56
        %p123 = pneg %p53
        %p124 = pneg %p77
        %p125 = pneg %p74
        %s126 = smul.u32 4, %s14
        %p127 = scmp.lt.s32.totalorder %s126, 7
        %s128 = scalar_select %p127, %s126, 7
        %s129 = smul.addr %s128, 8
        %s130 = scalar_lea.vmem %s1, %s129
        %s131 = smul.u32 4, %s14
        %p132 = scmp.eq.s32.totalorder %s14, 0
        // Predicated region
        $region29: #{tpu_custom_call.1} parent=27 // pred_check
          %p133 = pneg %p132
        $region30: #{tpu_custom_call.1} parent=27 // pred_check_branch
          %135 = sbr.rel (%p133) target = $region32
        $region31: #{tpu_custom_call.1} parent=27 // pred_region
          %vm136 = vcmask 7168
          %137 = vst.msk [vmem:[#allocation2] sm:$0xff] %vm136, 0.0
          %138 = vst.msk [vmem:[#allocation2 + $0x8] sm:$0xff] %vm136, 0.0
          %139 = vst.msk [vmem:[#allocation2 + $0x10] sm:$0xff] %vm136, 0.0
          %140 = vst.msk [vmem:[#allocation2 + $0x18] sm:$0xff] %vm136, 0.0
        $region32: #{tpu_custom_call.1} parent=27 // pred_fallthru
          _
        %v141 = vld [vmem:[%s0] sm:$0xff]
        %v142 = vld [vmem:[%s0 + $0x8] sm:$0xff]
        %v143 = vld [vmem:[%s130] sm:$0xff]
        %v144 = vld [vmem:[%s130 + $0x8] sm:$0xff]
        %v145 = vld [vmem:[%s130 + $0x10] sm:$0xff]
        %v146 = vld [vmem:[%s130 + $0x18] sm:$0xff]
        %v147 = vlaneseq
        %v148 = vand.u32 %v147, 127
        %149 = vset.pattern.permute.xlu0 0
        %150 = vperm.xlu0 %149, %v143
        %v151 = vpop.permute.xlu0 %150
        %152 = vset.pattern.permute.xlu0 0
        %153 = vperm.xlu0 %152, %v144
        %v154 = vpop.permute.xlu0 %153
        %155 = vset.pattern.permute.xlu0 0
        %156 = vperm.xlu0 %155, %v145
        %v157 = vpop.permute.xlu0 %156
        %158 = vset.pattern.permute.xlu0 0
        %159 = vperm.xlu0 %158, %v146
        %v160 = vpop.permute.xlu0 %159
        %vm161 = vcmp.eq.s32.totalorder %v148, %v151
        %vm162 = vcmp.eq.s32.totalorder %v148, %v154
        %vm163 = vcmp.eq.s32.totalorder %v148, %v157
        %vm164 = vcmp.eq.s32.totalorder %v148, %v160
        %v165 = vsel %vm161, 1, 0
        %v166 = vsel %vm162, 1, 0
        %v167 = vsel %vm163, 1, 0
        %v168 = vsel %vm164, 1, 0
        %v169 = vcvt.s32.f32 %v165
        %v170 = vcvt.s32.f32 %v166
        %v171 = vcvt.s32.f32 %v167
        %v172 = vcvt.s32.f32 %v168
        %173 = vset.pattern.permute.xlu0 1
        %174 = vperm.xlu0 %173, %v143
        %v175 = vpop.permute.xlu0 %174
        %176 = vset.pattern.permute.xlu0 1
        %177 = vperm.xlu0 %176, %v144
        %v178 = vpop.permute.xlu0 %177
        %179 = vset.pattern.permute.xlu0 1
        %180 = vperm.xlu0 %179, %v145
        %v181 = vpop.permute.xlu0 %180
        %182 = vset.pattern.permute.xlu0 1
        %183 = vperm.xlu0 %182, %v146
        %v184 = vpop.permute.xlu0 %183
        %vm185 = vcmp.eq.s32.totalorder %v148, %v175
        %vm186 = vcmp.eq.s32.totalorder %v148, %v178
        %vm187 = vcmp.eq.s32.totalorder %v148, %v181
        %vm188 = vcmp.eq.s32.totalorder %v148, %v184
        %v189 = vsel %vm185, 1, 0
        %v190 = vsel %vm186, 1, 0
        %v191 = vsel %vm187, 1, 0
        %v192 = vsel %vm188, 1, 0
        %v193 = vcvt.s32.f32 %v189
        %v194 = vcvt.s32.f32 %v190
        %v195 = vcvt.s32.f32 %v191
        %v196 = vcvt.s32.f32 %v192
        %v197 = vsub.f32 %v169, %v193
        %v198 = vsub.f32 %v170, %v194
        %v199 = vsub.f32 %v171, %v195
        %v200 = vsub.f32 %v172, %v196
        %201 = vset.pattern.permute.xlu0 2
        %202 = vperm.xlu0 %201, %v143
        %v203 = vpop.permute.xlu0 %202
        %204 = vset.pattern.permute.xlu0 2
        %205 = vperm.xlu0 %204, %v144
        %v206 = vpop.permute.xlu0 %205
        %207 = vset.pattern.permute.xlu0 2
        %208 = vperm.xlu0 %207, %v145
        %v209 = vpop.permute.xlu0 %208
        %210 = vset.pattern.permute.xlu0 2
        %211 = vperm.xlu0 %210, %v146
        %v212 = vpop.permute.xlu0 %211
        %vm213 = vcmp.eq.s32.totalorder %v148, %v203
        %vm214 = vcmp.eq.s32.totalorder %v148, %v206
        %vm215 = vcmp.eq.s32.totalorder %v148, %v209
        %vm216 = vcmp.eq.s32.totalorder %v148, %v212
        %v217 = vsel %vm213, 1, 0
        %v218 = vsel %vm214, 1, 0
        %v219 = vsel %vm215, 1, 0
        %v220 = vsel %vm216, 1, 0
        %v221 = vcvt.s32.f32 %v217
        %v222 = vcvt.s32.f32 %v218
        %v223 = vcvt.s32.f32 %v219
        %v224 = vcvt.s32.f32 %v220
        %v225 = vsub.f32 %v169, %v221
        %v226 = vsub.f32 %v170, %v222
        %v227 = vsub.f32 %v171, %v223
        %v228 = vsub.f32 %v172, %v224
        %vm229 = vcmask 130048
        %v231 = vsel %vm229, %v197, 0
        %v234 = vsel %vm229, %v198, 0
        %v237 = vsel %vm229, %v199, 0
        %v240 = vsel %vm229, %v200, 0
        %242 = vmatprep.subr.mxu0 0.0
        %243 = vmatpush1.msra.mxu0 0.0
        %244 = vmatprep.subr.mxu0 0.0
        %245 = vmatpush1.msra.mxu0 0.0
        %246 = vmatprep.subr.mxu0 0.0
        %247 = vmatpush1.msra.mxu0 0.0
        %248 = vmatprep.subr.mxu0 0.0
        %249 = vmatpush1.msra.mxu0 0.0
        %250 = vmatprep.subr.mxu0 0.0
        %251 = vmatpush1.msra.mxu0 0.0
        %252 = vmatprep.subr.mxu0 0.0
        %253 = vmatpush1.msra.mxu0 0.0
        %254 = vmatprep.subr.mxu0 0.0
        %255 = vmatpush1.msra.mxu0 0.0
        %256 = vmatprep.subr.mxu0 0.0
        %257 = vmatpush1.msra.mxu0 0.0
        %258 = vmatprep.subr.mxu0 0.0
        %259 = vmatpush1.msra.mxu0 0.0
        %260 = vmatprep.subr.mxu0 0.0
        %261 = vmatpush1.msra.mxu0 0.0
        %262 = vmatprep.subr.mxu0 0.0
        %263 = vmatpush1.msra.mxu0 0.0
        %264 = vmatprep.subr.mxu0 0.0
        %265 = vmatpush1.msra.mxu0 0.0
        %266 = vmatprep.subr.mxu0 0.0
        %267 = vmatpush1.msra.mxu0 0.0
        %268 = vmatprep.subr.mxu0 0.0
        %269 = vmatpush1.msra.mxu0 0.0
        %270 = vmatprep.subr.mxu0 0.0
        %271 = vmatpush1.msra.mxu0 %v142
        %272 = vmatprep.subr.mxu0 0.0
        %273 = vmatpush1.msra.mxu0 %v141
        %274 = vmatprep.subr.mxu0 0.0
        %275 = vmatpush2.msra.mxu0 0.0
        %276 = vmatprep.subr.mxu0 0.0
        %277 = vmatpush2.msra.mxu0 0.0
        %278 = vmatprep.subr.mxu0 0.0
        %279 = vmatpush2.msra.mxu0 0.0
        %280 = vmatprep.subr.mxu0 0.0
        %281 = vmatpush2.msra.mxu0 0.0
        %282 = vmatprep.subr.mxu0 0.0
        %283 = vmatpush2.msra.mxu0 0.0
        %284 = vmatprep.subr.mxu0 0.0
        %285 = vmatpush2.msra.mxu0 0.0
        %286 = vmatprep.subr.mxu0 0.0
        %287 = vmatpush2.msra.mxu0 0.0
        %288 = vmatprep.subr.mxu0 0.0
        %289 = vmatpush2.msra.mxu0 0.0
        %290 = vmatprep.subr.mxu0 0.0
        %291 = vmatpush2.msra.mxu0 0.0
        %292 = vmatprep.subr.mxu0 0.0
        %293 = vmatpush2.msra.mxu0 0.0
        %294 = vmatprep.subr.mxu0 0.0
        %295 = vmatpush2.msra.mxu0 0.0
        %296 = vmatprep.subr.mxu0 0.0
        %297 = vmatpush2.msra.mxu0 0.0
        %298 = vmatprep.subr.mxu0 0.0
        %299 = vmatpush2.msra.mxu0 0.0
        %300 = vmatprep.subr.mxu0 0.0
        %301 = vmatpush2.msra.mxu0 0.0
        %302 = vmatprep.subr.mxu0 0.0
        %303 = vmatpush2.msra.mxu0 0.0
        %304 = vmatprep.subr.mxu0 0.0
        %305 = vmatpush2.msra.mxu0 0.0
        %306 = vmatprep.mubr.f32.mxu0 0.0
        %307 = vmatmul.mubr.f32.gmra.mxu0 %v231
        %v308 = vpop.f32.mrf.mxu0
        %v309 = vadd.f32 0.0, %v308
        %v310 = vpop.f32.mrf.mxu0
        %311 = vmatprep.mubr.f32.mxu0 0.0
        %312 = vmatmul.mubr.f32.gmra.mxu0 %v234
        %v313 = vpop.f32.mrf.mxu0
        %v314 = vadd.f32 0.0, %v313
        %v315 = vpop.f32.mrf.mxu0
        %316 = vmatprep.mubr.f32.mxu0 0.0
        %317 = vmatmul.mubr.f32.gmra.mxu0 %v237
        %v318 = vpop.f32.mrf.mxu0
        %v319 = vadd.f32 0.0, %v318
        %v320 = vpop.f32.mrf.mxu0
        %321 = vmatprep.mubr.f32.mxu0 0.0
        %322 = vmatmul.mubr.f32.gmra.mxu0 %v240
        %v323 = vpop.f32.mrf.mxu0
        %v324 = vadd.f32 0.0, %v323
        %v325 = vpop.f32.mrf.mxu0
        %326 = vdwg.mxu0
        %v328 = vsel %vm229, %v225, 0
        %v331 = vsel %vm229, %v226, 0
        %v334 = vsel %vm229, %v227, 0
        %v337 = vsel %vm229, %v228, 0
        %339 = vmatprep.subr.mxu0 0.0
        %340 = vmatpush1.msra.mxu0 0.0
        %341 = vmatprep.subr.mxu0 0.0
        %342 = vmatpush1.msra.mxu0 0.0
        %343 = vmatprep.subr.mxu0 0.0
        %344 = vmatpush1.msra.mxu0 0.0
        %345 = vmatprep.subr.mxu0 0.0
        %346 = vmatpush1.msra.mxu0 0.0
        %347 = vmatprep.subr.mxu0 0.0
        %348 = vmatpush1.msra.mxu0 0.0
        %349 = vmatprep.subr.mxu0 0.0
        %350 = vmatpush1.msra.mxu0 0.0
        %351 = vmatprep.subr.mxu0 0.0
        %352 = vmatpush1.msra.mxu0 0.0
        %353 = vmatprep.subr.mxu0 0.0
        %354 = vmatpush1.msra.mxu0 0.0
        %355 = vmatprep.subr.mxu0 0.0
        %356 = vmatpush1.msra.mxu0 0.0
        %357 = vmatprep.subr.mxu0 0.0
        %358 = vmatpush1.msra.mxu0 0.0
        %359 = vmatprep.subr.mxu0 0.0
        %360 = vmatpush1.msra.mxu0 0.0
        %361 = vmatprep.subr.mxu0 0.0
        %362 = vmatpush1.msra.mxu0 0.0
        %363 = vmatprep.subr.mxu0 0.0
        %364 = vmatpush1.msra.mxu0 0.0
        %365 = vmatprep.subr.mxu0 0.0
        %366 = vmatpush1.msra.mxu0 0.0
        %367 = vmatprep.subr.mxu0 0.0
        %368 = vmatpush1.msra.mxu0 %v142
        %369 = vmatprep.subr.mxu0 0.0
        %370 = vmatpush1.msra.mxu0 %v141
        %371 = vmatprep.subr.mxu0 0.0
        %372 = vmatpush2.msra.mxu0 0.0
        %373 = vmatprep.subr.mxu0 0.0
        %374 = vmatpush2.msra.mxu0 0.0
        %375 = vmatprep.subr.mxu0 0.0
        %376 = vmatpush2.msra.mxu0 0.0
        %377 = vmatprep.subr.mxu0 0.0
        %378 = vmatpush2.msra.mxu0 0.0
        %379 = vmatprep.subr.mxu0 0.0
        %380 = vmatpush2.msra.mxu0 0.0
        %381 = vmatprep.subr.mxu0 0.0
        %382 = vmatpush2.msra.mxu0 0.0
        %383 = vmatprep.subr.mxu0 0.0
        %384 = vmatpush2.msra.mxu0 0.0
        %385 = vmatprep.subr.mxu0 0.0
        %386 = vmatpush2.msra.mxu0 0.0
        %387 = vmatprep.subr.mxu0 0.0
        %388 = vmatpush2.msra.mxu0 0.0
        %389 = vmatprep.subr.mxu0 0.0
        %390 = vmatpush2.msra.mxu0 0.0
        %391 = vmatprep.subr.mxu0 0.0
        %392 = vmatpush2.msra.mxu0 0.0
        %393 = vmatprep.subr.mxu0 0.0
        %394 = vmatpush2.msra.mxu0 0.0
        %395 = vmatprep.subr.mxu0 0.0
        %396 = vmatpush2.msra.mxu0 0.0
        %397 = vmatprep.subr.mxu0 0.0
        %398 = vmatpush2.msra.mxu0 0.0
        %399 = vmatprep.subr.mxu0 0.0
        %400 = vmatpush2.msra.mxu0 0.0
        %401 = vmatprep.subr.mxu0 0.0
        %402 = vmatpush2.msra.mxu0 0.0
        %403 = vmatprep.mubr.f32.mxu0 0.0
        %404 = vmatmul.mubr.f32.gmra.mxu0 %v328
        %v405 = vpop.f32.mrf.mxu0
        %v406 = vadd.f32 0.0, %v405
        %v407 = vpop.f32.mrf.mxu0
        %408 = vmatprep.mubr.f32.mxu0 0.0
        %409 = vmatmul.mubr.f32.gmra.mxu0 %v331
        %v410 = vpop.f32.mrf.mxu0
        %v411 = vadd.f32 0.0, %v410
        %v412 = vpop.f32.mrf.mxu0
        %413 = vmatprep.mubr.f32.mxu0 0.0
        %414 = vmatmul.mubr.f32.gmra.mxu0 %v334
        %v415 = vpop.f32.mrf.mxu0
        %v416 = vadd.f32 0.0, %v415
        %v417 = vpop.f32.mrf.mxu0
        %418 = vmatprep.mubr.f32.mxu0 0.0
        %419 = vmatmul.mubr.f32.gmra.mxu0 %v337
        %v420 = vpop.f32.mrf.mxu0
        %v421 = vadd.f32 0.0, %v420
        %v422 = vpop.f32.mrf.mxu0
        %423 = vdwg.mxu0
        %v424 = vmul.f32 %v309, %v309
        %v425 = vmul.f32 %v314, %v314
        %v426 = vmul.f32 %v319, %v319
        %v427 = vmul.f32 %v324, %v324
        %v428 = vmul.f32 %v406, %v406
        %v429 = vmul.f32 %v411, %v411
        %v430 = vmul.f32 %v416, %v416
        %v431 = vmul.f32 %v421, %v421
        %v432 = vsub.f32 %v424, %v428
        %v433 = vsub.f32 %v425, %v429
        %v434 = vsub.f32 %v426, %v430
        %v435 = vsub.f32 %v427, %v431
        %vm436 = vcmask 261120
        %v437 = vsel %vm436, %v432, 0.0
        %438 = vadd.xlane.f32.xlu0 %v437
        %v439 = vpop.xlane.xlu0 %438
        %v440 = vsel %vm436, %v433, 0.0
        %441 = vadd.xlane.f32.xlu0 %v440
        %v442 = vpop.xlane.xlu0 %441
        %v443 = vsel %vm436, %v434, 0.0
        %444 = vadd.xlane.f32.xlu0 %v443
        %v445 = vpop.xlane.xlu0 %444
        %v446 = vsel %vm436, %v435, 0.0
        %447 = vadd.xlane.f32.xlu0 %v446
        %v448 = vpop.xlane.xlu0 %447
        %v449 = vadd.f32 %v439, 1.0
        %v450 = vadd.f32 %v442, 1.0
        %v451 = vadd.f32 %v445, 1.0
        %v452 = vadd.f32 %v448, 1.0
        %v453 = vmax.f32 %v449, 0.0
        %v454 = vmax.f32 %v450, 0.0
        %v455 = vmax.f32 %v451, 0.0
        %v456 = vmax.f32 %v452, 0.0
        %s457 = smul.u32 %s14, 32
        %v458 = vlaneseq
        %v459 = vshrl.u32 %v458, 7
        %v460 = vadd.s32 %v459, 8
        %v461 = vadd.s32 %v459, 16
        %v462 = vadd.s32 %v459, 24
        %v463 = vstv %s457
        %v464 = vadd.s32 %v463, %v459
        %v465 = vadd.s32 %v463, %v460
        %v466 = vadd.s32 %v463, %v461
        %v467 = vadd.s32 %v463, %v462
        %v468 = vld [vmem:[#allocation2] sm:$0xff]
        %v469 = vld [vmem:[#allocation2 + $0x8] sm:$0xff]
        %v470 = vld [vmem:[#allocation2 + $0x10] sm:$0xff]
        %v471 = vld [vmem:[#allocation2 + $0x18] sm:$0xff]
        %vm472 = vcmp.lt.s32.totalorder %v464, 48
        %vm473 = vcmp.lt.s32.totalorder %v465, 48
        %vm474 = vcmp.lt.s32.totalorder %v466, 48
        %vm475 = vcmp.lt.s32.totalorder %v467, 48
        %v476 = vsel %vm472, %v453, 0.0
        %v477 = vsel %vm473, %v454, 0.0
        %v478 = vsel %vm474, %v455, 0.0
        %v479 = vsel %vm475, %v456, 0.0
        %v480 = vadd.f32 %v468, %v476
        %v481 = vadd.f32 %v469, %v477
        %v482 = vadd.f32 %v470, %v478
        %v483 = vadd.f32 %v471, %v479
        %vm484 = vcmask 7168
        %485 = vst.msk [vmem:[#allocation2] sm:$0xff] %vm484, %v480
        %486 = vst.msk [vmem:[#allocation2 + $0x8] sm:$0xff] %vm484, %v481
        %487 = vst.msk [vmem:[#allocation2 + $0x10] sm:$0xff] %vm484, %v482
        %488 = vst.msk [vmem:[#allocation2 + $0x18] sm:$0xff] %vm484, %v483
        %p489 = scmp.eq.s32.totalorder %s14, 1
        // Predicated region
        $region33: #{tpu_custom_call.1} parent=27 // pred_check
          %p490 = pneg %p489
        $region34: #{tpu_custom_call.1} parent=27 // pred_check_branch
          %492 = sbr.rel (%p490) target = $region36
        $region35: #{tpu_custom_call.1} parent=27 // pred_region
          %v493 = vld [vmem:[#allocation2] sm:$0xff]
          %v494 = vld [vmem:[#allocation2 + $0x8] sm:$0xff]
          %v495 = vld [vmem:[#allocation2 + $0x10] sm:$0xff]
          %v496 = vld [vmem:[#allocation2 + $0x18] sm:$0xff]
          %v497 = vsel %vm484, %v493, 0.0
          %v498 = vsel %vm484, %v494, 0.0
          %v499 = vadd.f32 %v497, %v498
          %v500 = vsel %vm484, %v495, 0.0
          %v501 = vadd.f32 %v499, %v500
          %v502 = vsel %vm484, %v496, 0.0
          %v503 = vadd.f32 %v501, %v502
          %504 = vadd.xlane.f32.xlu0 %v503
          %v505 = vpop.xlane.xlu0 %504
          %v506 = vrot.slane %v505, 4
          %v507 = vadd.f32 %v505, %v506
          %v508 = vrot.slane %v507, 2
          %v509 = vadd.f32 %v507, %v508
          %v510 = vrot.slane %v509, 1
          %v511 = vadd.f32 %v509, %v510
          %s512 = vtos %v511
          %v513 = vsel %vm436, %v141, 0.0
          %v514 = vsel %vm436, %v142, 0.0
          %v515 = vadd.f32 %v513, %v514
          %v516 = vrot.slane %v515, 4
          %v517 = vadd.f32 %v515, %v516
          %v518 = vrot.slane %v517, 2
          %v519 = vadd.f32 %v517, %v518
          %v520 = vrot.slane %v519, 1
          %v521 = vadd.f32 %v519, %v520
          %v522 = vmul.f32 %v521, 0.0625
          %v523 = vsub.f32 %v141, %v522
          %v524 = vsub.f32 %v142, %v522
          %v525 = vmul.f32 %v523, %v523
          %v526 = vmul.f32 %v524, %v524
          %v527 = vsel %vm436, %v525, 0.0
          %v528 = vsel %vm436, %v526, 0.0
          %v529 = vadd.f32 %v527, %v528
          %v530 = vrot.slane %v529, 4
          %v531 = vadd.f32 %v529, %v530
          %v532 = vrot.slane %v531, 2
          %v533 = vadd.f32 %v531, %v532
          %v534 = vrot.slane %v533, 1
          %v535 = vadd.f32 %v533, %v534
          %v536 = vrsqrt.pop %v535
          %v537 = vmul.f32 %v523, %v536
          %v538 = vmul.f32 %v524, %v536
          %539 = vxpose.xlu0.b32.start [1/16] %v537, 128
          %540 = vxpose.xlu0.b32.cont [2/16] %v538, 128
          %541 = vxpose.xlu0.b32.cont [3/16] 0.0, 128
          %542 = vxpose.xlu0.b32.cont [4/16] 0.0, 128
          %543 = vxpose.xlu0.b32.cont [5/16] 0.0, 128
          %544 = vxpose.xlu0.b32.cont [6/16] 0.0, 128
          %545 = vxpose.xlu0.b32.cont [7/16] 0.0, 128
          %546 = vxpose.xlu0.b32.cont [8/16] 0.0, 128
          %547 = vxpose.xlu0.b32.cont [9/16] 0.0, 128
          %548 = vxpose.xlu0.b32.cont [10/16] 0.0, 128
          %549 = vxpose.xlu0.b32.cont [11/16] 0.0, 128
          %550 = vxpose.xlu0.b32.cont [12/16] 0.0, 128
          %551 = vxpose.xlu0.b32.cont [13/16] 0.0, 128
          %552 = vxpose.xlu0.b32.cont [14/16] 0.0, 128
          %553 = vxpose.xlu0.b32.cont [15/16] 0.0, 128
          %554 = vxpose.xlu0.b32.end [16/16] 0.0, 128
          %v555 = vpop.trf.xlu0
          %v556 = vpop.trf.xlu0
          %v557 = vpop.trf.xlu0
          %v558 = vpop.trf.xlu0
          %v559 = vpop.trf.xlu0
          %v560 = vpop.trf.xlu0
          %v561 = vpop.trf.xlu0
          %v562 = vpop.trf.xlu0
          %v563 = vpop.trf.xlu0
          %v564 = vpop.trf.xlu0
          %v565 = vpop.trf.xlu0
          %v566 = vpop.trf.xlu0
          %v567 = vpop.trf.xlu0
          %v568 = vpop.trf.xlu0
          %v569 = vpop.trf.xlu0
          %v570 = vpop.trf.xlu0
          %v572 = vsel %vm229, %v555, 0
          %v575 = vsel %vm229, %v556, 0
          %v578 = vsel %vm229, %v557, 0
          %v581 = vsel %vm229, %v558, 0
          %583 = vmatprep.subr.mxu0 0.0
          %584 = vmatpush1.msra.mxu0 0.0
          %585 = vmatprep.subr.mxu0 0.0
          %586 = vmatpush1.msra.mxu0 0.0
          %587 = vmatprep.subr.mxu0 0.0
          %588 = vmatpush1.msra.mxu0 0.0
          %589 = vmatprep.subr.mxu0 0.0
          %590 = vmatpush1.msra.mxu0 0.0
          %591 = vmatprep.subr.mxu0 0.0
          %592 = vmatpush1.msra.mxu0 0.0
          %593 = vmatprep.subr.mxu0 0.0
          %594 = vmatpush1.msra.mxu0 0.0
          %595 = vmatprep.subr.mxu0 0.0
          %596 = vmatpush1.msra.mxu0 0.0
          %597 = vmatprep.subr.mxu0 0.0
          %598 = vmatpush1.msra.mxu0 0.0
          %599 = vmatprep.subr.mxu0 0.0
          %600 = vmatpush1.msra.mxu0 0.0
          %601 = vmatprep.subr.mxu0 0.0
          %602 = vmatpush1.msra.mxu0 0.0
          %603 = vmatprep.subr.mxu0 0.0
          %604 = vmatpush1.msra.mxu0 0.0
          %605 = vmatprep.subr.mxu0 0.0
          %606 = vmatpush1.msra.mxu0 0.0
          %607 = vmatprep.subr.mxu0 0.0
          %608 = vmatpush1.msra.mxu0 0.0
          %609 = vmatprep.subr.mxu0 0.0
          %610 = vmatpush1.msra.mxu0 0.0
          %611 = vmatprep.subr.mxu0 0.0
          %612 = vmatpush1.msra.mxu0 %v538
          %613 = vmatprep.subr.mxu0 0.0
          %614 = vmatpush1.msra.mxu0 %v537
          %615 = vmatprep.subr.mxu0 0.0
          %616 = vmatpush2.msra.mxu0 0.0
          %617 = vmatprep.subr.mxu0 0.0
          %618 = vmatpush2.msra.mxu0 0.0
          %619 = vmatprep.subr.mxu0 0.0
          %620 = vmatpush2.msra.mxu0 0.0
          %621 = vmatprep.subr.mxu0 0.0
          %622 = vmatpush2.msra.mxu0 0.0
          %623 = vmatprep.subr.mxu0 0.0
          %624 = vmatpush2.msra.mxu0 0.0
          %625 = vmatprep.subr.mxu0 0.0
          %626 = vmatpush2.msra.mxu0 0.0
          %627 = vmatprep.subr.mxu0 0.0
          %628 = vmatpush2.msra.mxu0 0.0
          %629 = vmatprep.subr.mxu0 0.0
          %630 = vmatpush2.msra.mxu0 0.0
          %631 = vmatprep.subr.mxu0 0.0
          %632 = vmatpush2.msra.mxu0 0.0
          %633 = vmatprep.subr.mxu0 0.0
          %634 = vmatpush2.msra.mxu0 0.0
          %635 = vmatprep.subr.mxu0 0.0
          %636 = vmatpush2.msra.mxu0 0.0
          %637 = vmatprep.subr.mxu0 0.0
          %638 = vmatpush2.msra.mxu0 0.0
          %639 = vmatprep.subr.mxu0 0.0
          %640 = vmatpush2.msra.mxu0 0.0
          %641 = vmatprep.subr.mxu0 0.0
          %642 = vmatpush2.msra.mxu0 0.0
          %643 = vmatprep.subr.mxu0 0.0
          %644 = vmatpush2.msra.mxu0 0.0
          %645 = vmatprep.subr.mxu0 0.0
          %646 = vmatpush2.msra.mxu0 0.0
          %647 = vmatprep.mubr.f32.mxu0 0.0
          %648 = vmatmul.mubr.f32.gmra.mxu0 %v572
          %v649 = vpop.f32.mrf.mxu0
          %v650 = vadd.f32 0.0, %v649
          %v651 = vpop.f32.mrf.mxu0
          %652 = vmatprep.mubr.f32.mxu0 0.0
          %653 = vmatmul.mubr.f32.gmra.mxu0 %v575
          %v654 = vpop.f32.mrf.mxu0
          %v655 = vadd.f32 0.0, %v654
          %v656 = vpop.f32.mrf.mxu0
          %657 = vmatprep.mubr.f32.mxu0 0.0
          %658 = vmatmul.mubr.f32.gmra.mxu0 %v578
          %v659 = vpop.f32.mrf.mxu0
          %v660 = vadd.f32 0.0, %v659
          %v661 = vpop.f32.mrf.mxu0
          %662 = vmatprep.mubr.f32.mxu0 0.0
          %663 = vmatmul.mubr.f32.gmra.mxu0 %v581
          %v664 = vpop.f32.mrf.mxu0
          %v665 = vadd.f32 0.0, %v664
          %v666 = vpop.f32.mrf.mxu0
          %667 = vdwg.mxu0
          %v668 = vmul.f32 %v650, %v650
          %v669 = vmul.f32 %v655, %v655
          %v670 = vmul.f32 %v660, %v660
          %v671 = vmul.f32 %v665, %v665
          %v672 = vsel %vm436, %v668, 0.0
          %v673 = vsel %vm436, %v669, 0.0
          %v674 = vadd.f32 %v672, %v673
          %v675 = vsel %vm436, %v670, 0.0
          %v676 = vadd.f32 %v674, %v675
          %v677 = vsel %vm436, %v671, 0.0
          %v678 = vadd.f32 %v676, %v677
          %679 = vadd.xlane.f32.xlu0 %v678
          %v680 = vpop.xlane.xlu0 %679
          %v681 = vrot.slane %v680, 4
          %v682 = vadd.f32 %v680, %v681
          %v683 = vrot.slane %v682, 2
          %v684 = vadd.f32 %v682, %v683
          %v685 = vrot.slane %v684, 1
          %v686 = vadd.f32 %v684, %v685
          %s687 = vtos %v686
          %s688 = ssub.f32 %s687, 32.0
          %v689 = vrcp.pop 992.0
          %s690 = vtos %v689
          %s691 = smul.f32 %s688, %s690
          %v692 = vrcp.pop 48.0
          %s693 = vtos %v692
          %s694 = smul.f32 %s512, %s693
          %s695 = smul.f32 %s691, 0.1
          %s696 = sadd.f32 %s694, %s695
          %s697 = scalar_lea.smem [#allocation3], 0
          %698 = sst [smem:[%s697]] %s696
        $region36: #{tpu_custom_call.1} parent=27 // pred_fallthru
          _
        // Predicated region
        $region37: #{tpu_custom_call.1} parent=27 // pred_check
          %p699 = pneg %p74
        $region38: #{tpu_custom_call.1} parent=27 // pred_check_branch
          %701 = sbr.rel (%p699) target = $region40
        $region39: #{tpu_custom_call.1} parent=27 // pred_region
          %s703 = ssub.s32 16, 16
          %704 = vsyncadd [#allocation4], %s703
          %707 = dma.smem_to_hbm [#allocation3], 16, %s2, [#allocation4]
        $region40: #{tpu_custom_call.1} parent=27 // pred_fallthru
          _
        // Predicated region
        $region41: #{tpu_custom_call.1} parent=27 // pred_check
          %p708 = pneg %p74
        $region42: #{tpu_custom_call.1} parent=27 // pred_check_branch
          %710 = sbr.rel (%p708) target = $region44
        $region43: #{tpu_custom_call.1} parent=27 // pred_region
          %711 = dma.done [#allocation4], 16
        $region44: #{tpu_custom_call.1} parent=27 // pred_fallthru
          _
        %712 = sfence
      $region28: #{tpu_custom_call.1} parent=5 // pred_fallthru
        _
      %p713 = scmp.le.s32.totalorder 2, %s9
      // Predicated region
      $region45: #{tpu_custom_call.1} parent=5 // pred_check
        %p714 = pneg %p713
      $region46: #{tpu_custom_call.1} parent=5 // pred_check_branch
        %716 = sbr.rel (%p714) target = $region48
      $region47: #{tpu_custom_call.1} parent=5 // pred_region
        %s717 = ssub.s32 %s9, 2
      $region48: #{tpu_custom_call.1} parent=5 // pred_fallthru
        _
    $region6: #{tpu_custom_call.1} parent=1 // loop_footer
      %s13 = sadd.s32 1, %s9
    $region7: #{tpu_custom_call.1} parent=1 // loop_footer_branch
      %8 = sbr.rel target = $region3
    $region8: #{tpu_custom_call.1} parent=1 // loop_exit
      _
    %718 = vsyncpa [#allocation4], 1
    %s719 = scalar_lea.sflag [#allocation4], 1
    %720 = vsyncpa %s719, 1

// kernel: tpu_custom_call.1
$region0: #{tpu_custom_call.1}
  #allocation0 [shape = 'u32[]', space=smem, size = 0x4, offset = 0x4, fixed_abs, tag = 'smem constant byte address 0x4 - core index']
  #allocation1 [shape = 'u32[144,128]{1,0:T(1,128)}', space=vmem, size = 0x12000, scoped, tag = 'internal scratch']
  #allocation2 [shape = 'f32[32,1]{1,0:T(8,128)}', space=vmem, size = 0x4000, scoped, tag = 'scratch operand']
  %s0 = inlined_call_operand.vmem [shape: f32[16,32], index: 0, kind: input, shape index: {}]
  %s1 = inlined_call_operand.vmem [shape: s32[64,3], index: 1, kind: input, shape index: {}]
  %s2 = inlined_call_operand.hbm [shape: f32[1,1], index: 2, kind: output, shape index: {}]
  %s3 = sld [smem:[#allocation0]]
  $region49: #{tpu_custom_call.1} parent=0
    _
  %s5 = ssub.s32 1, %s3
  %s6 = scalar_select 0, %s5, %s3
  $region1: #{tpu_custom_call.1} parent=0
    #allocation3 [shape = 'u8[512]{0}', space=smem, size = 0x200, scoped, tag = 'output window, operand 0, single buffered']
    #allocation4 [shape = 's32[2]{0}', space=sflag, size = 0x8, scoped, tag = 'scoped memory for tpu_custom_call.1']
    %7 = vsyncpa [#allocation4], 0
    loop: start=0, step=1, limit=4
    $region2: #{tpu_custom_call.1} parent=1 // loop_pre_header
      _
    $region3: #{tpu_custom_call.1} parent=1 // loop_header
      %s9 = sphi 0, %s13
      %p10 = scmp.ge.s32.totalorder %s9, 4
      %s17 = sphi 0, %s17
      %s19 = sphi 0, %s17
      %s20 = sphi 0, %s19
      %s34 = sphi 0, %s20
      %s40 = sphi 0, %s42
      %s43 = sphi 0, %s40
      %s44 = sphi 0, %s43
      %s60 = sphi 0, %s44
      %s64 = sphi 0, %s64
      %s66 = sphi 0, %s64
      %s67 = sphi 0, %s66
      %s81 = sphi 0, %s67
    $region4: #{tpu_custom_call.1} parent=1 // loop_header_branch
      %12 = sbr.rel (%p10) target = $region8
    $region5: #{tpu_custom_call.1} parent=1 // loop_body
      %s14 = ssub.s32 %s9, 1
      %s15 = ssub.s32 %s9, 2
      %s16 = sadd.s32 %s9, 1
      %s18 = sadd.s32 %s17, 1
      %p21 = scmp.eq.s32.totalorder %s9, 1
      %p22 = scmp.ne.s32.totalorder %s17, %s19
      %p23 = scmp.eq.s32.totalorder %s9, 0
      %p24 = por %p22, %p23
      %p25 = scmp.ne.s32.totalorder %s17, %s19
      %p26 = scmp.eq.s32.totalorder %s14, 1
      %p27 = por %p25, %p26
      %p28 = scmp.ne.s32.totalorder %s19, %s20
      %p29 = scmp.eq.s32.totalorder %s14, 0
      %p30 = por %p28, %p29
      %p31 = scmp.ne.s32.totalorder %s19, %s20
      %p32 = scmp.eq.s32.totalorder %s15, 1
      %p33 = por %p31, %p32
      %p35 = scmp.ne.s32.totalorder %s20, %s34
      %p36 = scmp.eq.s32.totalorder %s15, 0
      %p37 = por %p35, %p36
      %s38 = ssub.s32 %s9, %s16
      %p39 = scmp.eq.s32.totalorder %s38, 0
      %s41 = sadd.s32 %s40, 1
      %s42 = scalar_select %p39, %s40, %s41
      %p45 = pneg %p39
      %p46 = scmp.eq.s32.totalorder %s9, 1
      %p47 = por %p45, %p46
      %p48 = scmp.ne.s32.totalorder %s40, %s43
      %p49 = scmp.eq.s32.totalorder %s9, 0
      %p50 = por %p48, %p49
      %p51 = scmp.ne.s32.totalorder %s40, %s43
      %p52 = scmp.eq.s32.totalorder %s14, 1
      %p53 = por %p51, %p52
      %p54 = scmp.ne.s32.totalorder %s43, %s44
      %p55 = scmp.eq.s32.totalorder %s14, 0
      %p56 = por %p54, %p55
      %p57 = scmp.ne.s32.totalorder %s43, %s44
      %p58 = scmp.eq.s32.totalorder %s15, 1
      %p59 = por %p57, %p58
      %p61 = scmp.ne.s32.totalorder %s44, %s60
      %p62 = scmp.eq.s32.totalorder %s15, 0
      %p63 = por %p61, %p62
      %s65 = sadd.s32 %s64, 1
      %p68 = scmp.eq.s32.totalorder %s9, 1
      %p69 = scmp.ne.s32.totalorder %s64, %s66
      %p70 = scmp.eq.s32.totalorder %s9, 0
      %p71 = por %p69, %p70
      %p72 = scmp.ne.s32.totalorder %s64, %s66
      %p73 = scmp.eq.s32.totalorder %s14, 1
      %p74 = por %p72, %p73
      %p75 = scmp.ne.s32.totalorder %s66, %s67
      %p76 = scmp.eq.s32.totalorder %s14, 0
      %p77 = por %p75, %p76
      %p78 = scmp.ne.s32.totalorder %s66, %s67
      %p79 = scmp.eq.s32.totalorder %s15, 1
      %p80 = por %p78, %p79
      %p82 = scmp.ne.s32.totalorder %s67, %s81
      %p83 = scmp.eq.s32.totalorder %s15, 0
      %p84 = por %p82, %p83
      %p85 = scmp.le.s32.totalorder 1, %s9
      %p86 = scmp.lt.s32.totalorder %s9, 3
      %p87 = pnand %p85, %p86
      %p88 = pneg %p87
      // Predicated region
      $region9: #{tpu_custom_call.1} parent=5 // pred_check
        _
      $region10: #{tpu_custom_call.1} parent=5 // pred_check_branch
        %90 = sbr.rel (%p87) target = $region12
      $region11: #{tpu_custom_call.1} parent=5 // pred_region
        %s91 = ssub.s32 %s9, 1
        // Predicated region
        $region13: #{tpu_custom_call.1} parent=11 // pred_check
          %p92 = pneg %p30
        $region14: #{tpu_custom_call.1} parent=11 // pred_check_branch
          %94 = sbr.rel (%p92) target = $region16
        $region15: #{tpu_custom_call.1} parent=11 // pred_region
          _
        $region16: #{tpu_custom_call.1} parent=11 // pred_fallthru
          _
      $region12: #{tpu_custom_call.1} parent=5 // pred_fallthru
        _
      %p95 = scmp.lt.s32.totalorder %s9, 2
      // Predicated region
      $region17: #{tpu_custom_call.1} parent=5 // pred_check
        %p96 = pneg %p95
      $region18: #{tpu_custom_call.1} parent=5 // pred_check_branch
        %98 = sbr.rel (%p96) target = $region20
      $region19: #{tpu_custom_call.1} parent=5 // pred_region
        // Predicated region
        $region21: #{tpu_custom_call.1} parent=19 // pred_check
          %p99 = pneg %p50
        $region22: #{tpu_custom_call.1} parent=19 // pred_check_branch
          %101 = sbr.rel (%p99) target = $region24
        $region23: #{tpu_custom_call.1} parent=19 // pred_region
          %s102 = smul.u32 4, %s9
          %p103 = scmp.lt.s32.totalorder %s102, 7
          %s104 = scalar_select %p103, %s102, 7
          %s105 = smul.addr %s104, 8
          %s106 = scalar_lea.vmem %s1, %s105
          %s107 = smul.u32 4, %s9
        $region24: #{tpu_custom_call.1} parent=19 // pred_fallthru
          _
      $region20: #{tpu_custom_call.1} parent=5 // pred_fallthru
        _
      %p108 = scmp.le.s32.totalorder 1, %s9
      %p109 = scmp.lt.s32.totalorder %s9, 3
      %p110 = pnand %p108, %p109
      %p111 = pneg %p110
      // Predicated region
      $region25: #{tpu_custom_call.1} parent=5 // pred_check
        _
      $region26: #{tpu_custom_call.1} parent=5 // pred_check_branch
        %113 = sbr.rel (%p110) target = $region28
      $region27: #{tpu_custom_call.1} parent=5 // pred_region
        %s114 = ssub.s32 %s9, 1
        %p115 = pneg %p30
        %p116 = pneg %p27
        %s117 = smul.u32 4, %s14
        %p118 = scmp.lt.s32.totalorder %s117, 7
        %s119 = scalar_select %p118, %s117, 7
        %s120 = smul.addr %s119, 8
        %s121 = scalar_lea.vmem %s1, %s120
        %p122 = pneg %p56
        %p123 = pneg %p53
        %p124 = pneg %p77
        %p125 = pneg %p74
        %s126 = smul.u32 4, %s14
        %p127 = scmp.lt.s32.totalorder %s126, 7
        %s128 = scalar_select %p127, %s126, 7
        %s129 = smul.addr %s128, 8
        %s130 = scalar_lea.vmem %s1, %s129
        %s131 = smul.u32 4, %s14
        %p132 = scmp.eq.s32.totalorder %s14, 0
        // Predicated region
        $region29: #{tpu_custom_call.1} parent=27 // pred_check
          %p133 = pneg %p132
        $region30: #{tpu_custom_call.1} parent=27 // pred_check_branch
          %135 = sbr.rel (%p133) target = $region32
        $region31: #{tpu_custom_call.1} parent=27 // pred_region
          %vm136 = vcmask 7168
          %137 = vst.msk [vmem:[#allocation2] sm:$0xff] %vm136, 0.0
          %138 = vst.msk [vmem:[#allocation2 + $0x8] sm:$0xff] %vm136, 0.0
          %139 = vst.msk [vmem:[#allocation2 + $0x10] sm:$0xff] %vm136, 0.0
          %140 = vst.msk [vmem:[#allocation2 + $0x18] sm:$0xff] %vm136, 0.0
        $region32: #{tpu_custom_call.1} parent=27 // pred_fallthru
          _
        %v141 = vld [vmem:[%s0] sm:$0xff]
        %v142 = vld [vmem:[%s0 + $0x8] sm:$0xff]
        %v143 = vld [vmem:[%s130] sm:$0xff]
        %v144 = vld [vmem:[%s130 + $0x8] sm:$0xff]
        %v145 = vld [vmem:[%s130 + $0x10] sm:$0xff]
        %v146 = vld [vmem:[%s130 + $0x18] sm:$0xff]
        %v147 = vlaneseq
        %v148 = vand.u32 %v147, 127
        %149 = vset.pattern.permute.xlu0 0
        %150 = vperm.xlu0 %149, %v143
        %v151 = vpop.permute.xlu0 %150
        %152 = vset.pattern.permute.xlu0 0
        %153 = vperm.xlu0 %152, %v144
        %v154 = vpop.permute.xlu0 %153
        %155 = vset.pattern.permute.xlu0 0
        %156 = vperm.xlu0 %155, %v145
        %v157 = vpop.permute.xlu0 %156
        %158 = vset.pattern.permute.xlu0 0
        %159 = vperm.xlu0 %158, %v146
        %v160 = vpop.permute.xlu0 %159
        %vm161 = vcmp.eq.s32.totalorder %v148, %v151
        %vm162 = vcmp.eq.s32.totalorder %v148, %v154
        %vm163 = vcmp.eq.s32.totalorder %v148, %v157
        %vm164 = vcmp.eq.s32.totalorder %v148, %v160
        %v165 = vsel %vm161, 1, 0
        %v166 = vsel %vm162, 1, 0
        %v167 = vsel %vm163, 1, 0
        %v168 = vsel %vm164, 1, 0
        %v169 = vcvt.s32.f32 %v165
        %v170 = vcvt.s32.f32 %v166
        %v171 = vcvt.s32.f32 %v167
        %v172 = vcvt.s32.f32 %v168
        %173 = vset.pattern.permute.xlu0 1
        %174 = vperm.xlu0 %173, %v143
        %v175 = vpop.permute.xlu0 %174
        %176 = vset.pattern.permute.xlu0 1
        %177 = vperm.xlu0 %176, %v144
        %v178 = vpop.permute.xlu0 %177
        %179 = vset.pattern.permute.xlu0 1
        %180 = vperm.xlu0 %179, %v145
        %v181 = vpop.permute.xlu0 %180
        %182 = vset.pattern.permute.xlu0 1
        %183 = vperm.xlu0 %182, %v146
        %v184 = vpop.permute.xlu0 %183
        %vm185 = vcmp.eq.s32.totalorder %v148, %v175
        %vm186 = vcmp.eq.s32.totalorder %v148, %v178
        %vm187 = vcmp.eq.s32.totalorder %v148, %v181
        %vm188 = vcmp.eq.s32.totalorder %v148, %v184
        %v189 = vsel %vm185, 1, 0
        %v190 = vsel %vm186, 1, 0
        %v191 = vsel %vm187, 1, 0
        %v192 = vsel %vm188, 1, 0
        %v193 = vcvt.s32.f32 %v189
        %v194 = vcvt.s32.f32 %v190
        %v195 = vcvt.s32.f32 %v191
        %v196 = vcvt.s32.f32 %v192
        %v197 = vsub.f32 %v169, %v193
        %v198 = vsub.f32 %v170, %v194
        %v199 = vsub.f32 %v171, %v195
        %v200 = vsub.f32 %v172, %v196
        %201 = vset.pattern.permute.xlu0 2
        %202 = vperm.xlu0 %201, %v143
        %v203 = vpop.permute.xlu0 %202
        %204 = vset.pattern.permute.xlu0 2
        %205 = vperm.xlu0 %204, %v144
        %v206 = vpop.permute.xlu0 %205
        %207 = vset.pattern.permute.xlu0 2
        %208 = vperm.xlu0 %207, %v145
        %v209 = vpop.permute.xlu0 %208
        %210 = vset.pattern.permute.xlu0 2
        %211 = vperm.xlu0 %210, %v146
        %v212 = vpop.permute.xlu0 %211
        %vm213 = vcmp.eq.s32.totalorder %v148, %v203
        %vm214 = vcmp.eq.s32.totalorder %v148, %v206
        %vm215 = vcmp.eq.s32.totalorder %v148, %v209
        %vm216 = vcmp.eq.s32.totalorder %v148, %v212
        %v217 = vsel %vm213, 1, 0
        %v218 = vsel %vm214, 1, 0
        %v219 = vsel %vm215, 1, 0
        %v220 = vsel %vm216, 1, 0
        %v221 = vcvt.s32.f32 %v217
        %v222 = vcvt.s32.f32 %v218
        %v223 = vcvt.s32.f32 %v219
        %v224 = vcvt.s32.f32 %v220
        %v225 = vsub.f32 %v169, %v221
        %v226 = vsub.f32 %v170, %v222
        %v227 = vsub.f32 %v171, %v223
        %v228 = vsub.f32 %v172, %v224
        %vm229 = vcmask 130048
        %v231 = vsel %vm229, %v197, 0
        %v234 = vsel %vm229, %v198, 0
        %v237 = vsel %vm229, %v199, 0
        %v240 = vsel %vm229, %v200, 0
        %242 = vmatprep.subr.mxu0 0.0
        %243 = vmatpush1.msra.mxu0 0.0
        %244 = vmatprep.subr.mxu0 0.0
        %245 = vmatpush1.msra.mxu0 0.0
        %246 = vmatprep.subr.mxu0 0.0
        %247 = vmatpush1.msra.mxu0 0.0
        %248 = vmatprep.subr.mxu0 0.0
        %249 = vmatpush1.msra.mxu0 0.0
        %250 = vmatprep.subr.mxu0 0.0
        %251 = vmatpush1.msra.mxu0 0.0
        %252 = vmatprep.subr.mxu0 0.0
        %253 = vmatpush1.msra.mxu0 0.0
        %254 = vmatprep.subr.mxu0 0.0
        %255 = vmatpush1.msra.mxu0 0.0
        %256 = vmatprep.subr.mxu0 0.0
        %257 = vmatpush1.msra.mxu0 0.0
        %258 = vmatprep.subr.mxu0 0.0
        %259 = vmatpush1.msra.mxu0 0.0
        %260 = vmatprep.subr.mxu0 0.0
        %261 = vmatpush1.msra.mxu0 0.0
        %262 = vmatprep.subr.mxu0 0.0
        %263 = vmatpush1.msra.mxu0 0.0
        %264 = vmatprep.subr.mxu0 0.0
        %265 = vmatpush1.msra.mxu0 0.0
        %266 = vmatprep.subr.mxu0 0.0
        %267 = vmatpush1.msra.mxu0 0.0
        %268 = vmatprep.subr.mxu0 0.0
        %269 = vmatpush1.msra.mxu0 0.0
        %270 = vmatprep.subr.mxu0 0.0
        %271 = vmatpush1.msra.mxu0 %v142
        %272 = vmatprep.subr.mxu0 0.0
        %273 = vmatpush1.msra.mxu0 %v141
        %274 = vmatprep.subr.mxu0 0.0
        %275 = vmatpush2.msra.mxu0 0.0
        %276 = vmatprep.subr.mxu0 0.0
        %277 = vmatpush2.msra.mxu0 0.0
        %278 = vmatprep.subr.mxu0 0.0
        %279 = vmatpush2.msra.mxu0 0.0
        %280 = vmatprep.subr.mxu0 0.0
        %281 = vmatpush2.msra.mxu0 0.0
        %282 = vmatprep.subr.mxu0 0.0
        %283 = vmatpush2.msra.mxu0 0.0
        %284 = vmatprep.subr.mxu0 0.0
        %285 = vmatpush2.msra.mxu0 0.0
        %286 = vmatprep.subr.mxu0 0.0
        %287 = vmatpush2.msra.mxu0 0.0
        %288 = vmatprep.subr.mxu0 0.0
        %289 = vmatpush2.msra.mxu0 0.0
        %290 = vmatprep.subr.mxu0 0.0
        %291 = vmatpush2.msra.mxu0 0.0
        %292 = vmatprep.subr.mxu0 0.0
        %293 = vmatpush2.msra.mxu0 0.0
        %294 = vmatprep.subr.mxu0 0.0
        %295 = vmatpush2.msra.mxu0 0.0
        %296 = vmatprep.subr.mxu0 0.0
        %297 = vmatpush2.msra.mxu0 0.0
        %298 = vmatprep.subr.mxu0 0.0
        %299 = vmatpush2.msra.mxu0 0.0
        %300 = vmatprep.subr.mxu0 0.0
        %301 = vmatpush2.msra.mxu0 0.0
        %302 = vmatprep.subr.mxu0 0.0
        %303 = vmatpush2.msra.mxu0 0.0
        %304 = vmatprep.subr.mxu0 0.0
        %305 = vmatpush2.msra.mxu0 0.0
        %306 = vmatprep.mubr.f32.mxu0 0.0
        %307 = vmatmul.mubr.f32.gmra.mxu0 %v231
        %v308 = vpop.f32.mrf.mxu0
        %v309 = vadd.f32 0.0, %v308
        %v310 = vpop.f32.mrf.mxu0
        %311 = vmatprep.mubr.f32.mxu0 0.0
        %312 = vmatmul.mubr.f32.gmra.mxu0 %v234
        %v313 = vpop.f32.mrf.mxu0
        %v314 = vadd.f32 0.0, %v313
        %v315 = vpop.f32.mrf.mxu0
        %316 = vmatprep.mubr.f32.mxu0 0.0
        %317 = vmatmul.mubr.f32.gmra.mxu0 %v237
        %v318 = vpop.f32.mrf.mxu0
        %v319 = vadd.f32 0.0, %v318
        %v320 = vpop.f32.mrf.mxu0
        %321 = vmatprep.mubr.f32.mxu0 0.0
        %322 = vmatmul.mubr.f32.gmra.mxu0 %v240
        %v323 = vpop.f32.mrf.mxu0
        %v324 = vadd.f32 0.0, %v323
        %v325 = vpop.f32.mrf.mxu0
        %326 = vdwg.mxu0
        %v328 = vsel %vm229, %v225, 0
        %v331 = vsel %vm229, %v226, 0
        %v334 = vsel %vm229, %v227, 0
        %v337 = vsel %vm229, %v228, 0
        %339 = vmatprep.subr.mxu0 0.0
        %340 = vmatpush1.msra.mxu0 0.0
        %341 = vmatprep.subr.mxu0 0.0
        %342 = vmatpush1.msra.mxu0 0.0
        %343 = vmatprep.subr.mxu0 0.0
        %344 = vmatpush1.msra.mxu0 0.0
        %345 = vmatprep.subr.mxu0 0.0
        %346 = vmatpush1.msra.mxu0 0.0
        %347 = vmatprep.subr.mxu0 0.0
        %348 = vmatpush1.msra.mxu0 0.0
        %349 = vmatprep.subr.mxu0 0.0
        %350 = vmatpush1.msra.mxu0 0.0
        %351 = vmatprep.subr.mxu0 0.0
        %352 = vmatpush1.msra.mxu0 0.0
        %353 = vmatprep.subr.mxu0 0.0
        %354 = vmatpush1.msra.mxu0 0.0
        %355 = vmatprep.subr.mxu0 0.0
        %356 = vmatpush1.msra.mxu0 0.0
        %357 = vmatprep.subr.mxu0 0.0
        %358 = vmatpush1.msra.mxu0 0.0
        %359 = vmatprep.subr.mxu0 0.0
        %360 = vmatpush1.msra.mxu0 0.0
        %361 = vmatprep.subr.mxu0 0.0
        %362 = vmatpush1.msra.mxu0 0.0
        %363 = vmatprep.subr.mxu0 0.0
        %364 = vmatpush1.msra.mxu0 0.0
        %365 = vmatprep.subr.mxu0 0.0
        %366 = vmatpush1.msra.mxu0 0.0
        %367 = vmatprep.subr.mxu0 0.0
        %368 = vmatpush1.msra.mxu0 %v142
        %369 = vmatprep.subr.mxu0 0.0
        %370 = vmatpush1.msra.mxu0 %v141
        %371 = vmatprep.subr.mxu0 0.0
        %372 = vmatpush2.msra.mxu0 0.0
        %373 = vmatprep.subr.mxu0 0.0
        %374 = vmatpush2.msra.mxu0 0.0
        %375 = vmatprep.subr.mxu0 0.0
        %376 = vmatpush2.msra.mxu0 0.0
        %377 = vmatprep.subr.mxu0 0.0
        %378 = vmatpush2.msra.mxu0 0.0
        %379 = vmatprep.subr.mxu0 0.0
        %380 = vmatpush2.msra.mxu0 0.0
        %381 = vmatprep.subr.mxu0 0.0
        %382 = vmatpush2.msra.mxu0 0.0
        %383 = vmatprep.subr.mxu0 0.0
        %384 = vmatpush2.msra.mxu0 0.0
        %385 = vmatprep.subr.mxu0 0.0
        %386 = vmatpush2.msra.mxu0 0.0
        %387 = vmatprep.subr.mxu0 0.0
        %388 = vmatpush2.msra.mxu0 0.0
        %389 = vmatprep.subr.mxu0 0.0
        %390 = vmatpush2.msra.mxu0 0.0
        %391 = vmatprep.subr.mxu0 0.0
        %392 = vmatpush2.msra.mxu0 0.0
        %393 = vmatprep.subr.mxu0 0.0
        %394 = vmatpush2.msra.mxu0 0.0
        %395 = vmatprep.subr.mxu0 0.0
        %396 = vmatpush2.msra.mxu0 0.0
        %397 = vmatprep.subr.mxu0 0.0
        %398 = vmatpush2.msra.mxu0 0.0
        %399 = vmatprep.subr.mxu0 0.0
        %400 = vmatpush2.msra.mxu0 0.0
        %401 = vmatprep.subr.mxu0 0.0
        %402 = vmatpush2.msra.mxu0 0.0
        %403 = vmatprep.mubr.f32.mxu0 0.0
        %404 = vmatmul.mubr.f32.gmra.mxu0 %v328
        %v405 = vpop.f32.mrf.mxu0
        %v406 = vadd.f32 0.0, %v405
        %v407 = vpop.f32.mrf.mxu0
        %408 = vmatprep.mubr.f32.mxu0 0.0
        %409 = vmatmul.mubr.f32.gmra.mxu0 %v331
        %v410 = vpop.f32.mrf.mxu0
        %v411 = vadd.f32 0.0, %v410
        %v412 = vpop.f32.mrf.mxu0
        %413 = vmatprep.mubr.f32.mxu0 0.0
        %414 = vmatmul.mubr.f32.gmra.mxu0 %v334
        %v415 = vpop.f32.mrf.mxu0
        %v416 = vadd.f32 0.0, %v415
        %v417 = vpop.f32.mrf.mxu0
        %418 = vmatprep.mubr.f32.mxu0 0.0
        %419 = vmatmul.mubr.f32.gmra.mxu0 %v337
        %v420 = vpop.f32.mrf.mxu0
        %v421 = vadd.f32 0.0, %v420
        %v422 = vpop.f32.mrf.mxu0
        %423 = vdwg.mxu0
        %v424 = vmul.f32 %v309, %v309
        %v425 = vmul.f32 %v314, %v314
        %v426 = vmul.f32 %v319, %v319
        %v427 = vmul.f32 %v324, %v324
        %v428 = vmul.f32 %v406, %v406
        %v429 = vmul.f32 %v411, %v411
        %v430 = vmul.f32 %v416, %v416
        %v431 = vmul.f32 %v421, %v421
        %v432 = vsub.f32 %v424, %v428
        %v433 = vsub.f32 %v425, %v429
        %v434 = vsub.f32 %v426, %v430
        %v435 = vsub.f32 %v427, %v431
        %vm436 = vcmask 261120
        %v437 = vsel %vm436, %v432, 0.0
        %438 = vadd.xlane.f32.xlu0 %v437
        %v439 = vpop.xlane.xlu0 %438
        %v440 = vsel %vm436, %v433, 0.0
        %441 = vadd.xlane.f32.xlu0 %v440
        %v442 = vpop.xlane.xlu0 %441
        %v443 = vsel %vm436, %v434, 0.0
        %444 = vadd.xlane.f32.xlu0 %v443
        %v445 = vpop.xlane.xlu0 %444
        %v446 = vsel %vm436, %v435, 0.0
        %447 = vadd.xlane.f32.xlu0 %v446
        %v448 = vpop.xlane.xlu0 %447
        %v449 = vadd.f32 %v439, 1.0
        %v450 = vadd.f32 %v442, 1.0
        %v451 = vadd.f32 %v445, 1.0
        %v452 = vadd.f32 %v448, 1.0
        %v453 = vmax.f32 %v449, 0.0
        %v454 = vmax.f32 %v450, 0.0
        %v455 = vmax.f32 %v451, 0.0
        %v456 = vmax.f32 %v452, 0.0
        %s457 = smul.u32 %s14, 32
        %v458 = vlaneseq
        %v459 = vshrl.u32 %v458, 7
        %v460 = vadd.s32 %v459, 8
        %v461 = vadd.s32 %v459, 16
        %v462 = vadd.s32 %v459, 24
        %v463 = vstv %s457
        %v464 = vadd.s32 %v463, %v459
        %v465 = vadd.s32 %v463, %v460
        %v466 = vadd.s32 %v463, %v461
        %v467 = vadd.s32 %v463, %v462
        %v468 = vld [vmem:[#allocation2] sm:$0xff]
        %v469 = vld [vmem:[#allocation2 + $0x8] sm:$0xff]
        %v470 = vld [vmem:[#allocation2 + $0x10] sm:$0xff]
        %v471 = vld [vmem:[#allocation2 + $0x18] sm:$0xff]
        %vm472 = vcmp.lt.s32.totalorder %v464, 48
        %vm473 = vcmp.lt.s32.totalorder %v465, 48
        %vm474 = vcmp.lt.s32.totalorder %v466, 48
        %vm475 = vcmp.lt.s32.totalorder %v467, 48
        %v476 = vsel %vm472, %v453, 0.0
        %v477 = vsel %vm473, %v454, 0.0
        %v478 = vsel %vm474, %v455, 0.0
        %v479 = vsel %vm475, %v456, 0.0
        %v480 = vadd.f32 %v468, %v476
        %v481 = vadd.f32 %v469, %v477
        %v482 = vadd.f32 %v470, %v478
        %v483 = vadd.f32 %v471, %v479
        %vm484 = vcmask 7168
        %485 = vst.msk [vmem:[#allocation2] sm:$0xff] %vm484, %v480
        %486 = vst.msk [vmem:[#allocation2 + $0x8] sm:$0xff] %vm484, %v481
        %487 = vst.msk [vmem:[#allocation2 + $0x10] sm:$0xff] %vm484, %v482
        %488 = vst.msk [vmem:[#allocation2 + $0x18] sm:$0xff] %vm484, %v483
        %p489 = scmp.eq.s32.totalorder %s14, 1
        // Predicated region
        $region33: #{tpu_custom_call.1} parent=27 // pred_check
          %p490 = pneg %p489
        $region34: #{tpu_custom_call.1} parent=27 // pred_check_branch
          %492 = sbr.rel (%p490) target = $region36
        $region35: #{tpu_custom_call.1} parent=27 // pred_region
          %v493 = vld [vmem:[#allocation2] sm:$0xff]
          %v494 = vld [vmem:[#allocation2 + $0x8] sm:$0xff]
          %v495 = vld [vmem:[#allocation2 + $0x10] sm:$0xff]
          %v496 = vld [vmem:[#allocation2 + $0x18] sm:$0xff]
          %v497 = vsel %vm484, %v493, 0.0
          %v498 = vsel %vm484, %v494, 0.0
          %v499 = vadd.f32 %v497, %v498
          %v500 = vsel %vm484, %v495, 0.0
          %v501 = vadd.f32 %v499, %v500
          %v502 = vsel %vm484, %v496, 0.0
          %v503 = vadd.f32 %v501, %v502
          %504 = vadd.xlane.f32.xlu0 %v503
          %v505 = vpop.xlane.xlu0 %504
          %v506 = vrot.slane %v505, 4
          %v507 = vadd.f32 %v505, %v506
          %v508 = vrot.slane %v507, 2
          %v509 = vadd.f32 %v507, %v508
          %v510 = vrot.slane %v509, 1
          %v511 = vadd.f32 %v509, %v510
          %s512 = vtos %v511
          %v513 = vsel %vm436, %v141, 0.0
          %v514 = vsel %vm436, %v142, 0.0
          %v515 = vadd.f32 %v513, %v514
          %v516 = vrot.slane %v515, 4
          %v517 = vadd.f32 %v515, %v516
          %v518 = vrot.slane %v517, 2
          %v519 = vadd.f32 %v517, %v518
          %v520 = vrot.slane %v519, 1
          %v521 = vadd.f32 %v519, %v520
          %v522 = vmul.f32 %v521, 0.0625
          %v523 = vsub.f32 %v141, %v522
          %v524 = vsub.f32 %v142, %v522
          %v525 = vmul.f32 %v523, %v523
          %v526 = vmul.f32 %v524, %v524
          %v527 = vsel %vm436, %v525, 0.0
          %v528 = vsel %vm436, %v526, 0.0
          %v529 = vadd.f32 %v527, %v528
          %v530 = vrot.slane %v529, 4
          %v531 = vadd.f32 %v529, %v530
          %v532 = vrot.slane %v531, 2
          %v533 = vadd.f32 %v531, %v532
          %v534 = vrot.slane %v533, 1
          %v535 = vadd.f32 %v533, %v534
          %v536 = vrsqrt.pop %v535
          %v537 = vmul.f32 %v523, %v536
          %v538 = vmul.f32 %v524, %v536
          %539 = vxpose.xlu0.b32.start [1/16] %v537, 128
          %540 = vxpose.xlu0.b32.cont [2/16] %v538, 128
          %541 = vxpose.xlu0.b32.cont [3/16] 0.0, 128
          %542 = vxpose.xlu0.b32.cont [4/16] 0.0, 128
          %543 = vxpose.xlu0.b32.cont [5/16] 0.0, 128
          %544 = vxpose.xlu0.b32.cont [6/16] 0.0, 128
          %545 = vxpose.xlu0.b32.cont [7/16] 0.0, 128
          %546 = vxpose.xlu0.b32.cont [8/16] 0.0, 128
          %547 = vxpose.xlu0.b32.cont [9/16] 0.0, 128
          %548 = vxpose.xlu0.b32.cont [10/16] 0.0, 128
          %549 = vxpose.xlu0.b32.cont [11/16] 0.0, 128
          %550 = vxpose.xlu0.b32.cont [12/16] 0.0, 128
          %551 = vxpose.xlu0.b32.cont [13/16] 0.0, 128
          %552 = vxpose.xlu0.b32.cont [14/16] 0.0, 128
          %553 = vxpose.xlu0.b32.cont [15/16] 0.0, 128
          %554 = vxpose.xlu0.b32.end [16/16] 0.0, 128
          %v555 = vpop.trf.xlu0
          %v556 = vpop.trf.xlu0
          %v557 = vpop.trf.xlu0
          %v558 = vpop.trf.xlu0
          %v559 = vpop.trf.xlu0
          %v560 = vpop.trf.xlu0
          %v561 = vpop.trf.xlu0
          %v562 = vpop.trf.xlu0
          %v563 = vpop.trf.xlu0
          %v564 = vpop.trf.xlu0
          %v565 = vpop.trf.xlu0
          %v566 = vpop.trf.xlu0
          %v567 = vpop.trf.xlu0
          %v568 = vpop.trf.xlu0
          %v569 = vpop.trf.xlu0
          %v570 = vpop.trf.xlu0
          %v572 = vsel %vm229, %v555, 0
          %v575 = vsel %vm229, %v556, 0
          %v578 = vsel %vm229, %v557, 0
          %v581 = vsel %vm229, %v558, 0
          %583 = vmatprep.subr.mxu0 0.0
          %584 = vmatpush1.msra.mxu0 0.0
          %585 = vmatprep.subr.mxu0 0.0
          %586 = vmatpush1.msra.mxu0 0.0
          %587 = vmatprep.subr.mxu0 0.0
          %588 = vmatpush1.msra.mxu0 0.0
          %589 = vmatprep.subr.mxu0 0.0
          %590 = vmatpush1.msra.mxu0 0.0
          %591 = vmatprep.subr.mxu0 0.0
          %592 = vmatpush1.msra.mxu0 0.0
          %593 = vmatprep.subr.mxu0 0.0
          %594 = vmatpush1.msra.mxu0 0.0
          %595 = vmatprep.subr.mxu0 0.0
          %596 = vmatpush1.msra.mxu0 0.0
          %597 = vmatprep.subr.mxu0 0.0
          %598 = vmatpush1.msra.mxu0 0.0
          %599 = vmatprep.subr.mxu0 0.0
          %600 = vmatpush1.msra.mxu0 0.0
          %601 = vmatprep.subr.mxu0 0.0
          %602 = vmatpush1.msra.mxu0 0.0
          %603 = vmatprep.subr.mxu0 0.0
          %604 = vmatpush1.msra.mxu0 0.0
          %605 = vmatprep.subr.mxu0 0.0
          %606 = vmatpush1.msra.mxu0 0.0
          %607 = vmatprep.subr.mxu0 0.0
          %608 = vmatpush1.msra.mxu0 0.0
          %609 = vmatprep.subr.mxu0 0.0
          %610 = vmatpush1.msra.mxu0 0.0
          %611 = vmatprep.subr.mxu0 0.0
          %612 = vmatpush1.msra.mxu0 %v538
          %613 = vmatprep.subr.mxu0 0.0
          %614 = vmatpush1.msra.mxu0 %v537
          %615 = vmatprep.subr.mxu0 0.0
          %616 = vmatpush2.msra.mxu0 0.0
          %617 = vmatprep.subr.mxu0 0.0
          %618 = vmatpush2.msra.mxu0 0.0
          %619 = vmatprep.subr.mxu0 0.0
          %620 = vmatpush2.msra.mxu0 0.0
          %621 = vmatprep.subr.mxu0 0.0
          %622 = vmatpush2.msra.mxu0 0.0
          %623 = vmatprep.subr.mxu0 0.0
          %624 = vmatpush2.msra.mxu0 0.0
          %625 = vmatprep.subr.mxu0 0.0
          %626 = vmatpush2.msra.mxu0 0.0
          %627 = vmatprep.subr.mxu0 0.0
          %628 = vmatpush2.msra.mxu0 0.0
          %629 = vmatprep.subr.mxu0 0.0
          %630 = vmatpush2.msra.mxu0 0.0
          %631 = vmatprep.subr.mxu0 0.0
          %632 = vmatpush2.msra.mxu0 0.0
          %633 = vmatprep.subr.mxu0 0.0
          %634 = vmatpush2.msra.mxu0 0.0
          %635 = vmatprep.subr.mxu0 0.0
          %636 = vmatpush2.msra.mxu0 0.0
          %637 = vmatprep.subr.mxu0 0.0
          %638 = vmatpush2.msra.mxu0 0.0
          %639 = vmatprep.subr.mxu0 0.0
          %640 = vmatpush2.msra.mxu0 0.0
          %641 = vmatprep.subr.mxu0 0.0
          %642 = vmatpush2.msra.mxu0 0.0
          %643 = vmatprep.subr.mxu0 0.0
          %644 = vmatpush2.msra.mxu0 0.0
          %645 = vmatprep.subr.mxu0 0.0
          %646 = vmatpush2.msra.mxu0 0.0
          %647 = vmatprep.mubr.f32.mxu0 0.0
          %648 = vmatmul.mubr.f32.gmra.mxu0 %v572
          %v649 = vpop.f32.mrf.mxu0
          %v650 = vadd.f32 0.0, %v649
          %v651 = vpop.f32.mrf.mxu0
          %652 = vmatprep.mubr.f32.mxu0 0.0
          %653 = vmatmul.mubr.f32.gmra.mxu0 %v575
          %v654 = vpop.f32.mrf.mxu0
          %v655 = vadd.f32 0.0, %v654
          %v656 = vpop.f32.mrf.mxu0
          %657 = vmatprep.mubr.f32.mxu0 0.0
          %658 = vmatmul.mubr.f32.gmra.mxu0 %v578
          %v659 = vpop.f32.mrf.mxu0
          %v660 = vadd.f32 0.0, %v659
          %v661 = vpop.f32.mrf.mxu0
          %662 = vmatprep.mubr.f32.mxu0 0.0
          %663 = vmatmul.mubr.f32.gmra.mxu0 %v581
          %v664 = vpop.f32.mrf.mxu0
          %v665 = vadd.f32 0.0, %v664
          %v666 = vpop.f32.mrf.mxu0
          %667 = vdwg.mxu0
          %v668 = vmul.f32 %v650, %v650
          %v669 = vmul.f32 %v655, %v655
          %v670 = vmul.f32 %v660, %v660
          %v671 = vmul.f32 %v665, %v665
          %v672 = vsel %vm436, %v668, 0.0
          %v673 = vsel %vm436, %v669, 0.0
          %v674 = vadd.f32 %v672, %v673
          %v675 = vsel %vm436, %v670, 0.0
          %v676 = vadd.f32 %v674, %v675
          %v677 = vsel %vm436, %v671, 0.0
          %v678 = vadd.f32 %v676, %v677
          %679 = vadd.xlane.f32.xlu0 %v678
          %v680 = vpop.xlane.xlu0 %679
          %v681 = vrot.slane %v680, 4
          %v682 = vadd.f32 %v680, %v681
          %v683 = vrot.slane %v682, 2
          %v684 = vadd.f32 %v682, %v683
          %v685 = vrot.slane %v684, 1
          %v686 = vadd.f32 %v684, %v685
          %s687 = vtos %v686
          %s688 = ssub.f32 %s687, 32.0
          %v689 = vrcp.pop 992.0
          %s690 = vtos %v689
          %s691 = smul.f32 %s688, %s690
          %v692 = vrcp.pop 48.0
          %s693 = vtos %v692
          %s694 = smul.f32 %s512, %s693
          %s695 = smul.f32 %s691, 0.1
          %s696 = sadd.f32 %s694, %s695
          %s697 = scalar_lea.smem [#allocation3], 0
          %698 = sst [smem:[%s697]] %s696
        $region36: #{tpu_custom_call.1} parent=27 // pred_fallthru
          _
        // Predicated region
        $region37: #{tpu_custom_call.1} parent=27 // pred_check
          %p699 = pneg %p74
        $region38: #{tpu_custom_call.1} parent=27 // pred_check_branch
          %701 = sbr.rel (%p699) target = $region40
        $region39: #{tpu_custom_call.1} parent=27 // pred_region
          %s703 = ssub.s32 16, 16
          %704 = vsyncadd [#allocation4], %s703
          %707 = dma.smem_to_hbm [#allocation3], 16, %s2, [#allocation4]
        $region40: #{tpu_custom_call.1} parent=27 // pred_fallthru
          _
        // Predicated region
        $region41: #{tpu_custom_call.1} parent=27 // pred_check
          %p708 = pneg %p74
        $region42: #{tpu_custom_call.1} parent=27 // pred_check_branch
          %710 = sbr.rel (%p708) target = $region44
        $region43: #{tpu_custom_call.1} parent=27 // pred_region
          %711 = dma.done [#allocation4], 16
        $region44: #{tpu_custom_call.1} parent=27 // pred_fallthru
          _
        %712 = sfence
      $region28: #{tpu_custom_call.1} parent=5 // pred_fallthru
        _
      %p713 = scmp.le.s32.totalorder 2, %s9
      // Predicated region
      $region45: #{tpu_custom_call.1} parent=5 // pred_check
        %p714 = pneg %p713
      $region46: #{tpu_custom_call.1} parent=5 // pred_check_branch
        %716 = sbr.rel (%p714) target = $region48
      $region47: #{tpu_custom_call.1} parent=5 // pred_region
        %s717 = ssub.s32 %s9, 2
      $region48: #{tpu_custom_call.1} parent=5 // pred_fallthru
        _
    $region6: #{tpu_custom_call.1} parent=1 // loop_footer
      %s13 = sadd.s32 1, %s9
    $region7: #{tpu_custom_call.1} parent=1 // loop_footer_branch
      %8 = sbr.rel target = $region3
    $region8: #{tpu_custom_call.1} parent=1 // loop_exit
      _
    %718 = vsyncpa [#allocation4], 1
    %s719 = scalar_lea.sflag [#allocation4], 1
    %720 = vsyncpa %s719, 1

</llo_original>
